<compile_context>
chip_gen: v5e
topology: v5e:2x2
jax: 0.10.0
libtpu: 0.0.40
codegen_flags: <defaults>
</compile_context>

<pallas_src>
import functools

import jax
import jax.numpy as jnp
from jax.experimental import pallas as pl
from jax.experimental.pallas import tpu as pltpu


# ---------------------------------------------------------------------------
# Kernel
# ---------------------------------------------------------------------------
def _lstm_kernel(x_ref, wih0_ref, whh0_ref, b0_ref,
                 w1_ref, b1_ref, wfc_ref, bfc_ref, out_ref,
                 *, hidden_dim, seq_len, input_dim):
    """Whole forward pass, all tensors resident in VMEM.

    x_ref     : (T, B, D_in)  time-major input (B already sublane-padded).
    wih0_ref  : (D_in, 4H)    layer-0 input weights, gate order [i, f, o, g].
    whh0_ref  : (H, 4H)       layer-0 recurrent weights.
    b0_ref    : (1, 4H)       layer-0 combined bias (b_ih + b_hh).
    w1_ref    : (2H, 4H)      layer-1 fused [W_ih1; W_hh1].
    b1_ref    : (1, 4H)       layer-1 combined bias.
    wfc_ref   : (O, H)        final linear weight.
    bfc_ref   : (1, O)        final linear bias.
    out_ref   : (B, O)        output.
    """
    H = hidden_dim
    B = x_ref.shape[1]

    wih0 = wih0_ref[...]                 # (D_in, 4H)
    whh0 = whh0_ref[...]                 # (H, 4H)
    b0 = b0_ref[...]                     # (1, 4H)
    w1 = w1_ref[...]                     # (2H, 4H)
    b1 = b1_ref[...]                     # (1, 4H)

    # ---- hoisted layer-0 input projection + bias, all T timesteps at once ----
    x = x_ref[...]                       # (T, B, D_in)
    if input_dim == 1:
        # (T, B, 1) * (1, 4H) broadcast == x @ W_ih0 for the degenerate K=1 case.
        g_ih0_all = x * wih0 + b0                                   # (T, B, 4H)
    else:
        g_ih0_all = jnp.einsum("tbd,dk->tbk", x, wih0,
                               preferred_element_type=jnp.float32) + b0

    h0 = jnp.zeros((B, H), jnp.float32)
    c0 = jnp.zeros((B, H), jnp.float32)
    h1 = jnp.zeros((B, H), jnp.float32)
    c1 = jnp.zeros((B, H), jnp.float32)

    def cell_update(gates, c_prev):
        # Gate order [i, f, o, g]: one contiguous sigmoid, one tanh.
        ifo = jax.nn.sigmoid(gates[:, :3 * H])                      # (B, 3H)
        g = jnp.tanh(gates[:, 3 * H:])                              # (B, H)
        i = ifo[:, 0 * H:1 * H]
        f = ifo[:, 1 * H:2 * H]
        o = ifo[:, 2 * H:3 * H]
        c_new = f * c_prev + i * g
        h_new = o * jnp.tanh(c_new)
        return h_new, c_new

    # seq_len is small and static -> fully unrolled time loop (LLO visibility).
    for t in range(seq_len):
        # ---- layer 0: single MXU push (recurrent term only) ----
        gates0 = g_ih0_all[t] + jnp.dot(h0, whh0,
                                        preferred_element_type=jnp.float32)
        h0, c0 = cell_update(gates0, c0)

        # ---- layer 1: fused single MXU push ----
        hcat = jnp.concatenate([h0, h1], axis=-1)                   # (B, 2H)
        gates1 = jnp.dot(hcat, w1, preferred_element_type=jnp.float32) + b1
        h1, c1 = cell_update(gates1, c1)

    # Final Linear on the last timestep's top-layer hidden state.
    wfc = wfc_ref[...]                   # (O, H)
    if wfc.shape[0] == 1:
        out = jnp.sum(h1 * wfc, axis=-1, keepdims=True) + bfc_ref[...]
    else:
        out = jnp.dot(h1, wfc.T, preferred_element_type=jnp.float32) + bfc_ref[...]
    out_ref[...] = out.astype(out_ref.dtype)


# ---------------------------------------------------------------------------
# Parameter init (PyTorch layout) + packing for the kernel
# ---------------------------------------------------------------------------
def init_raw_params(key, input_dim=1, hidden_dim=32, output_dim=1):
    """PyTorch-style init: uniform(-1/sqrt(H), 1/sqrt(H)), PyTorch shapes."""
    H = hidden_dim
    bound = 1.0 / jnp.sqrt(jnp.float32(H))
    ks = jax.random.split(key, 12)

    def u(k, shape):
        return jax.random.uniform(k, shape, jnp.float32, -bound, bound)

    return {
        "wih0": u(ks[0], (4 * H, input_dim)),   # weight_ih_l0
        "whh0": u(ks[1], (4 * H, H)),           # weight_hh_l0
        "bih0": u(ks[2], (4 * H,)),
        "bhh0": u(ks[3], (4 * H,)),
        "wih1": u(ks[4], (4 * H, H)),           # weight_ih_l1
        "whh1": u(ks[5], (4 * H, H)),           # weight_hh_l1
        "bih1": u(ks[6], (4 * H,)),
        "bhh1": u(ks[7], (4 * H,)),
        "fcw": u(ks[8], (output_dim, H)),       # fc.weight
        "fcb": u(ks[9], (output_dim,)),         # fc.bias
    }


def pack_params(raw, hidden_dim=32):
    """Transpose, reorder gates [i,f,g,o]->[i,f,o,g], combine biases, fuse layer-1."""
    H = hidden_dim
    # Column permutation: new order = [i, f, o, g].
    perm = jnp.concatenate([jnp.arange(0, 2 * H),          # i, f
                            jnp.arange(3 * H, 4 * H),      # o
                            jnp.arange(2 * H, 3 * H)])     # g

    def prep_w(w):            # PyTorch (4H, in) -> (in, 4H), gate-reordered
        return w.T[:, perm]

    def prep_b(bih, bhh):     # combined bias, (1, 4H), gate-reordered
        return (bih + bhh).reshape(1, 4 * H)[:, perm]

    wih1 = prep_w(raw["wih1"])
    whh1 = prep_w(raw["whh1"])
    return {
        "wih0": prep_w(raw["wih0"]),                       # (D_in, 4H)
        "whh0": prep_w(raw["whh0"]),                       # (H, 4H)
        "b0": prep_b(raw["bih0"], raw["bhh0"]),            # (1, 4H)
        "w1": jnp.concatenate([wih1, whh1], axis=0),       # (2H, 4H) fused
        "b1": prep_b(raw["bih1"], raw["bhh1"]),            # (1, 4H)
        "wfc": raw["fcw"],                                 # (O, H)
        "bfc": raw["fcb"].reshape(1, -1),                  # (1, O)
    }


# ---------------------------------------------------------------------------
# Wrapper
# ---------------------------------------------------------------------------
def lstm_forward(x, params, hidden_dim=32):
    """x: (B, T, D_in) batch-first, same as the PyTorch module."""
    B, T, D = x.shape
    O = params["bfc"].shape[1]

    # Pad batch to the f32 sublane multiple (8) so per-step ops use full vregs.
    B_pad = ((B + 7) // 8) * 8
    if B_pad != B:
        x = jnp.pad(x, ((0, B_pad - B), (0, 0), (0, 0)))
    # Time-major layout: g_ih0_all[t] becomes a single dense (B_pad, 4H) tile.
    x_tm = jnp.transpose(x, (1, 0, 2)).astype(jnp.float32)          # (T, B_pad, D)

    kernel = functools.partial(
        _lstm_kernel, hidden_dim=hidden_dim, seq_len=T, input_dim=D)
    vmem = pl.BlockSpec(memory_space=pltpu.MemorySpace.VMEM)

    out = pl.pallas_call(
        kernel,
        out_shape=jax.ShapeDtypeStruct((B_pad, O), jnp.float32),
        in_specs=[vmem] * 8,
        out_specs=vmem,
    )(x_tm, params["wih0"], params["whh0"], params["b0"],
      params["w1"], params["b1"], params["wfc"], params["bfc"])
    return out[:B]


# ---------------------------------------------------------------------------
# Pure-JAX reference (PyTorch gate order, un-fused weights) for correctness
# ---------------------------------------------------------------------------
def _reference_forward(x, raw, hidden_dim=32):
    H = hidden_dim
    B = x.shape[0]

    def cell(gates, c):
        i = jax.nn.sigmoid(gates[:, 0 * H:1 * H])
        f = jax.nn.sigmoid(gates[:, 1 * H:2 * H])
        g = jnp.tanh(gates[:, 2 * H:3 * H])
        o = jax.nn.sigmoid(gates[:, 3 * H:4 * H])
        c = f * c + i * g
        return o * jnp.tanh(c), c

    h0 = jnp.zeros((B, H)); c0 = jnp.zeros((B, H))
    h1 = jnp.zeros((B, H)); c1 = jnp.zeros((B, H))
    for t in range(x.shape[1]):
        xt = x[:, t, :]
        g0 = xt @ raw["wih0"].T + h0 @ raw["whh0"].T + raw["bih0"] + raw["bhh0"]
        h0, c0 = cell(g0, c0)
        g1 = h0 @ raw["wih1"].T + h1 @ raw["whh1"].T + raw["bih1"] + raw["bhh1"]
        h1, c1 = cell(g1, c1)
    return h1 @ raw["fcw"].T + raw["fcb"]


if __name__ == "__main__":
    key = jax.random.PRNGKey(0)
    k_params, k_x = jax.random.split(key)

    B, T, D_IN, H, O = 2, 8, 1, 32, 1
    raw = init_raw_params(k_params, input_dim=D_IN, hidden_dim=H, output_dim=O)
    params = pack_params(raw, hidden_dim=H)
    x = jax.random.normal(k_x, (B, T, D_IN), dtype=jnp.float32)

    out = lstm_forward(x, params, hidden_dim=H)
    out = jax.block_until_ready(out)

    ref = _reference_forward(x, raw, hidden_dim=H)
    assert out.shape == (B, O)
    assert jnp.allclose(out, ref, atol=1e-5, rtol=1e-5)

    print("KERNEL_OK")
</pallas_src>

<mosaic_0001>
module attributes {stable_mosaic.version = 11 : i64} {
  func.func @_lstm_kernel(%arg0: memref<8x8x1xf32, #tpu.memory_space<vmem>>, %arg1: memref<1x128xf32, #tpu.memory_space<vmem>>, %arg2: memref<32x128xf32, #tpu.memory_space<vmem>>, %arg3: memref<1x128xf32, #tpu.memory_space<vmem>>, %arg4: memref<64x128xf32, #tpu.memory_space<vmem>>, %arg5: memref<1x128xf32, #tpu.memory_space<vmem>>, %arg6: memref<1x32xf32, #tpu.memory_space<vmem>>, %arg7: memref<1x1xf32, #tpu.memory_space<vmem>>, %arg8: memref<8x1xf32, #tpu.memory_space<vmem>>) attributes {dimension_semantics = [], scalar_prefetch = 0 : i64, scratch_operands = 0 : i64, tpu.core_type = #tpu.core_type<tc>} {
    %c0 = arith.constant 0 : index
    %c0_0 = arith.constant 0 : index
    %0 = vector.load %arg1[%c0, %c0_0] : memref<1x128xf32, #tpu.memory_space<vmem>>, vector<1x128xf32>
    %c0_1 = arith.constant 0 : index
    %c0_2 = arith.constant 0 : index
    %1 = vector.load %arg2[%c0_1, %c0_2] : memref<32x128xf32, #tpu.memory_space<vmem>>, vector<32x128xf32>
    %c0_3 = arith.constant 0 : index
    %c0_4 = arith.constant 0 : index
    %2 = vector.load %arg3[%c0_3, %c0_4] : memref<1x128xf32, #tpu.memory_space<vmem>>, vector<1x128xf32>
    %c0_5 = arith.constant 0 : index
    %c0_6 = arith.constant 0 : index
    %3 = vector.load %arg4[%c0_5, %c0_6] : memref<64x128xf32, #tpu.memory_space<vmem>>, vector<64x128xf32>
    %c0_7 = arith.constant 0 : index
    %c0_8 = arith.constant 0 : index
    %4 = vector.load %arg5[%c0_7, %c0_8] : memref<1x128xf32, #tpu.memory_space<vmem>>, vector<1x128xf32>
    %c0_9 = arith.constant 0 : index
    %c0_10 = arith.constant 0 : index
    %c0_11 = arith.constant 0 : index
    %5 = vector.load %arg0[%c0_9, %c0_10, %c0_11] : memref<8x8x1xf32, #tpu.memory_space<vmem>>, vector<8x8x1xf32>
    %6 = vector.shape_cast %0 : vector<1x128xf32> to vector<1x1x128xf32>
    %7 = vector.broadcast %5 : vector<8x8x1xf32> to vector<8x8x128xf32>
    %8 = vector.broadcast %6 : vector<1x1x128xf32> to vector<8x8x128xf32>
    %9 = arith.mulf %7, %8 : vector<8x8x128xf32>
    %10 = vector.shape_cast %2 : vector<1x128xf32> to vector<1x1x128xf32>
    %11 = vector.broadcast %10 : vector<1x1x128xf32> to vector<8x8x128xf32>
    %12 = arith.addf %9, %11 : vector<8x8x128xf32>
    %cst = arith.constant 0.000000e+00 : f32
    %13 = vector.broadcast %cst : f32 to vector<8x32xf32>
    %cst_12 = arith.constant 0.000000e+00 : f32
    %14 = vector.broadcast %cst_12 : f32 to vector<8x32xf32>
    %cst_13 = arith.constant 0.000000e+00 : f32
    %15 = vector.broadcast %cst_13 : f32 to vector<8x32xf32>
    %cst_14 = arith.constant 0.000000e+00 : f32
    %16 = vector.broadcast %cst_14 : f32 to vector<8x32xf32>
    %17 = vector.extract_strided_slice %12 {offsets = [0, 0, 0], sizes = [1, 8, 128], strides = [1, 1, 1]} : vector<8x8x128xf32> to vector<1x8x128xf32>
    %18 = vector.shape_cast %17 : vector<1x8x128xf32> to vector<8x128xf32>
    %cst_15 = arith.constant dense<0.000000e+00> : vector<8x128xf32>
    %19 = tpu.matmul %13, %1, %cst_15 {dimension_numbers = #tpu.dot_dimension_numbers<[1], [0], [0], [1], [0, 0, 1, 1], [], []>} : vector<8x32xf32>, vector<32x128xf32>, vector<8x128xf32> -> vector<8x128xf32>
    %20 = arith.addf %18, %19 : vector<8x128xf32>
    %21 = vector.extract_strided_slice %20 {offsets = [0, 0], sizes = [8, 96], strides = [1, 1]} : vector<8x128xf32> to vector<8x96xf32>
    %22 = arith.negf %21 : vector<8x96xf32>
    %23 = math.exp %22 : vector<8x96xf32>
    %cst_16 = arith.constant 1.000000e+00 : f32
    %24 = vector.broadcast %cst_16 : f32 to vector<8x96xf32>
    %25 = arith.addf %24, %23 : vector<8x96xf32>
    %26 = arith.divf %24, %25 : vector<8x96xf32>
    %27 = vector.extract_strided_slice %20 {offsets = [0, 96], sizes = [8, 32], strides = [1, 1]} : vector<8x128xf32> to vector<8x32xf32>
    %28 = math.tanh %27 : vector<8x32xf32>
    %29 = vector.extract_strided_slice %26 {offsets = [0, 0], sizes = [8, 32], strides = [1, 1]} : vector<8x96xf32> to vector<8x32xf32>
    %30 = vector.extract_strided_slice %26 {offsets = [0, 32], sizes = [8, 32], strides = [1, 1]} : vector<8x96xf32> to vector<8x32xf32>
    %31 = vector.extract_strided_slice %26 {offsets = [0, 64], sizes = [8, 32], strides = [1, 1]} : vector<8x96xf32> to vector<8x32xf32>
    %32 = arith.mulf %30, %14 : vector<8x32xf32>
    %33 = arith.mulf %29, %28 : vector<8x32xf32>
    %34 = arith.addf %32, %33 : vector<8x32xf32>
    %35 = math.tanh %34 : vector<8x32xf32>
    %36 = arith.mulf %31, %35 : vector<8x32xf32>
    %37 = tpu.concatenate %36, %15 in 1 : vector<8x32xf32>, vector<8x32xf32> -> vector<8x64xf32>
    %cst_17 = arith.constant dense<0.000000e+00> : vector<8x128xf32>
    %38 = tpu.matmul %37, %3, %cst_17 {dimension_numbers = #tpu.dot_dimension_numbers<[1], [0], [0], [1], [0, 0, 1, 1], [], []>} : vector<8x64xf32>, vector<64x128xf32>, vector<8x128xf32> -> vector<8x128xf32>
    %39 = vector.broadcast %4 : vector<1x128xf32> to vector<8x128xf32>
    %40 = arith.addf %38, %39 : vector<8x128xf32>
    %41 = vector.extract_strided_slice %40 {offsets = [0, 0], sizes = [8, 96], strides = [1, 1]} : vector<8x128xf32> to vector<8x96xf32>
    %42 = arith.negf %41 : vector<8x96xf32>
    %43 = math.exp %42 : vector<8x96xf32>
    %cst_18 = arith.constant 1.000000e+00 : f32
    %44 = vector.broadcast %cst_18 : f32 to vector<8x96xf32>
    %45 = arith.addf %44, %43 : vector<8x96xf32>
    %46 = arith.divf %44, %45 : vector<8x96xf32>
    %47 = vector.extract_strided_slice %40 {offsets = [0, 96], sizes = [8, 32], strides = [1, 1]} : vector<8x128xf32> to vector<8x32xf32>
    %48 = math.tanh %47 : vector<8x32xf32>
    %49 = vector.extract_strided_slice %46 {offsets = [0, 0], sizes = [8, 32], strides = [1, 1]} : vector<8x96xf32> to vector<8x32xf32>
    %50 = vector.extract_strided_slice %46 {offsets = [0, 32], sizes = [8, 32], strides = [1, 1]} : vector<8x96xf32> to vector<8x32xf32>
    %51 = vector.extract_strided_slice %46 {offsets = [0, 64], sizes = [8, 32], strides = [1, 1]} : vector<8x96xf32> to vector<8x32xf32>
    %52 = arith.mulf %50, %16 : vector<8x32xf32>
    %53 = arith.mulf %49, %48 : vector<8x32xf32>
    %54 = arith.addf %52, %53 : vector<8x32xf32>
    %55 = math.tanh %54 : vector<8x32xf32>
    %56 = arith.mulf %51, %55 : vector<8x32xf32>
    %57 = vector.extract_strided_slice %12 {offsets = [1, 0, 0], sizes = [1, 8, 128], strides = [1, 1, 1]} : vector<8x8x128xf32> to vector<1x8x128xf32>
    %58 = vector.shape_cast %57 : vector<1x8x128xf32> to vector<8x128xf32>
    %cst_19 = arith.constant dense<0.000000e+00> : vector<8x128xf32>
    %59 = tpu.matmul %36, %1, %cst_19 {dimension_numbers = #tpu.dot_dimension_numbers<[1], [0], [0], [1], [0, 0, 1, 1], [], []>} : vector<8x32xf32>, vector<32x128xf32>, vector<8x128xf32> -> vector<8x128xf32>
    %60 = arith.addf %58, %59 : vector<8x128xf32>
    %61 = vector.extract_strided_slice %60 {offsets = [0, 0], sizes = [8, 96], strides = [1, 1]} : vector<8x128xf32> to vector<8x96xf32>
    %62 = arith.negf %61 : vector<8x96xf32>
    %63 = math.exp %62 : vector<8x96xf32>
    %cst_20 = arith.constant 1.000000e+00 : f32
    %64 = vector.broadcast %cst_20 : f32 to vector<8x96xf32>
    %65 = arith.addf %64, %63 : vector<8x96xf32>
    %66 = arith.divf %64, %65 : vector<8x96xf32>
    %67 = vector.extract_strided_slice %60 {offsets = [0, 96], sizes = [8, 32], strides = [1, 1]} : vector<8x128xf32> to vector<8x32xf32>
    %68 = math.tanh %67 : vector<8x32xf32>
    %69 = vector.extract_strided_slice %66 {offsets = [0, 0], sizes = [8, 32], strides = [1, 1]} : vector<8x96xf32> to vector<8x32xf32>
    %70 = vector.extract_strided_slice %66 {offsets = [0, 32], sizes = [8, 32], strides = [1, 1]} : vector<8x96xf32> to vector<8x32xf32>
    %71 = vector.extract_strided_slice %66 {offsets = [0, 64], sizes = [8, 32], strides = [1, 1]} : vector<8x96xf32> to vector<8x32xf32>
    %72 = arith.mulf %70, %34 : vector<8x32xf32>
    %73 = arith.mulf %69, %68 : vector<8x32xf32>
    %74 = arith.addf %72, %73 : vector<8x32xf32>
    %75 = math.tanh %74 : vector<8x32xf32>
    %76 = arith.mulf %71, %75 : vector<8x32xf32>
    %77 = tpu.concatenate %76, %56 in 1 : vector<8x32xf32>, vector<8x32xf32> -> vector<8x64xf32>
    %cst_21 = arith.constant dense<0.000000e+00> : vector<8x128xf32>
    %78 = tpu.matmul %77, %3, %cst_21 {dimension_numbers = #tpu.dot_dimension_numbers<[1], [0], [0], [1], [0, 0, 1, 1], [], []>} : vector<8x64xf32>, vector<64x128xf32>, vector<8x128xf32> -> vector<8x128xf32>
    %79 = vector.broadcast %4 : vector<1x128xf32> to vector<8x128xf32>
    %80 = arith.addf %78, %79 : vector<8x128xf32>
    %81 = vector.extract_strided_slice %80 {offsets = [0, 0], sizes = [8, 96], strides = [1, 1]} : vector<8x128xf32> to vector<8x96xf32>
    %82 = arith.negf %81 : vector<8x96xf32>
    %83 = math.exp %82 : vector<8x96xf32>
    %cst_22 = arith.constant 1.000000e+00 : f32
    %84 = vector.broadcast %cst_22 : f32 to vector<8x96xf32>
    %85 = arith.addf %84, %83 : vector<8x96xf32>
    %86 = arith.divf %84, %85 : vector<8x96xf32>
    %87 = vector.extract_strided_slice %80 {offsets = [0, 96], sizes = [8, 32], strides = [1, 1]} : vector<8x128xf32> to vector<8x32xf32>
    %88 = math.tanh %87 : vector<8x32xf32>
    %89 = vector.extract_strided_slice %86 {offsets = [0, 0], sizes = [8, 32], strides = [1, 1]} : vector<8x96xf32> to vector<8x32xf32>
    %90 = vector.extract_strided_slice %86 {offsets = [0, 32], sizes = [8, 32], strides = [1, 1]} : vector<8x96xf32> to vector<8x32xf32>
    %91 = vector.extract_strided_slice %86 {offsets = [0, 64], sizes = [8, 32], strides = [1, 1]} : vector<8x96xf32> to vector<8x32xf32>
    %92 = arith.mulf %90, %54 : vector<8x32xf32>
    %93 = arith.mulf %89, %88 : vector<8x32xf32>
    %94 = arith.addf %92, %93 : vector<8x32xf32>
    %95 = math.tanh %94 : vector<8x32xf32>
    %96 = arith.mulf %91, %95 : vector<8x32xf32>
    %97 = vector.extract_strided_slice %12 {offsets = [2, 0, 0], sizes = [1, 8, 128], strides = [1, 1, 1]} : vector<8x8x128xf32> to vector<1x8x128xf32>
    %98 = vector.shape_cast %97 : vector<1x8x128xf32> to vector<8x128xf32>
    %cst_23 = arith.constant dense<0.000000e+00> : vector<8x128xf32>
    %99 = tpu.matmul %76, %1, %cst_23 {dimension_numbers = #tpu.dot_dimension_numbers<[1], [0], [0], [1], [0, 0, 1, 1], [], []>} : vector<8x32xf32>, vector<32x128xf32>, vector<8x128xf32> -> vector<8x128xf32>
    %100 = arith.addf %98, %99 : vector<8x128xf32>
    %101 = vector.extract_strided_slice %100 {offsets = [0, 0], sizes = [8, 96], strides = [1, 1]} : vector<8x128xf32> to vector<8x96xf32>
    %102 = arith.negf %101 : vector<8x96xf32>
    %103 = math.exp %102 : vector<8x96xf32>
    %cst_24 = arith.constant 1.000000e+00 : f32
    %104 = vector.broadcast %cst_24 : f32 to vector<8x96xf32>
    %105 = arith.addf %104, %103 : vector<8x96xf32>
    %106 = arith.divf %104, %105 : vector<8x96xf32>
    %107 = vector.extract_strided_slice %100 {offsets = [0, 96], sizes = [8, 32], strides = [1, 1]} : vector<8x128xf32> to vector<8x32xf32>
    %108 = math.tanh %107 : vector<8x32xf32>
    %109 = vector.extract_strided_slice %106 {offsets = [0, 0], sizes = [8, 32], strides = [1, 1]} : vector<8x96xf32> to vector<8x32xf32>
    %110 = vector.extract_strided_slice %106 {offsets = [0, 32], sizes = [8, 32], strides = [1, 1]} : vector<8x96xf32> to vector<8x32xf32>
    %111 = vector.extract_strided_slice %106 {offsets = [0, 64], sizes = [8, 32], strides = [1, 1]} : vector<8x96xf32> to vector<8x32xf32>
    %112 = arith.mulf %110, %74 : vector<8x32xf32>
    %113 = arith.mulf %109, %108 : vector<8x32xf32>
    %114 = arith.addf %112, %113 : vector<8x32xf32>
    %115 = math.tanh %114 : vector<8x32xf32>
    %116 = arith.mulf %111, %115 : vector<8x32xf32>
    %117 = tpu.concatenate %116, %96 in 1 : vector<8x32xf32>, vector<8x32xf32> -> vector<8x64xf32>
    %cst_25 = arith.constant dense<0.000000e+00> : vector<8x128xf32>
    %118 = tpu.matmul %117, %3, %cst_25 {dimension_numbers = #tpu.dot_dimension_numbers<[1], [0], [0], [1], [0, 0, 1, 1], [], []>} : vector<8x64xf32>, vector<64x128xf32>, vector<8x128xf32> -> vector<8x128xf32>
    %119 = vector.broadcast %4 : vector<1x128xf32> to vector<8x128xf32>
    %120 = arith.addf %118, %119 : vector<8x128xf32>
    %121 = vector.extract_strided_slice %120 {offsets = [0, 0], sizes = [8, 96], strides = [1, 1]} : vector<8x128xf32> to vector<8x96xf32>
    %122 = arith.negf %121 : vector<8x96xf32>
    %123 = math.exp %122 : vector<8x96xf32>
    %cst_26 = arith.constant 1.000000e+00 : f32
    %124 = vector.broadcast %cst_26 : f32 to vector<8x96xf32>
    %125 = arith.addf %124, %123 : vector<8x96xf32>
    %126 = arith.divf %124, %125 : vector<8x96xf32>
    %127 = vector.extract_strided_slice %120 {offsets = [0, 96], sizes = [8, 32], strides = [1, 1]} : vector<8x128xf32> to vector<8x32xf32>
    %128 = math.tanh %127 : vector<8x32xf32>
    %129 = vector.extract_strided_slice %126 {offsets = [0, 0], sizes = [8, 32], strides = [1, 1]} : vector<8x96xf32> to vector<8x32xf32>
    %130 = vector.extract_strided_slice %126 {offsets = [0, 32], sizes = [8, 32], strides = [1, 1]} : vector<8x96xf32> to vector<8x32xf32>
    %131 = vector.extract_strided_slice %126 {offsets = [0, 64], sizes = [8, 32], strides = [1, 1]} : vector<8x96xf32> to vector<8x32xf32>
    %132 = arith.mulf %130, %94 : vector<8x32xf32>
    %133 = arith.mulf %129, %128 : vector<8x32xf32>
    %134 = arith.addf %132, %133 : vector<8x32xf32>
    %135 = math.tanh %134 : vector<8x32xf32>
    %136 = arith.mulf %131, %135 : vector<8x32xf32>
    %137 = vector.extract_strided_slice %12 {offsets = [3, 0, 0], sizes = [1, 8, 128], strides = [1, 1, 1]} : vector<8x8x128xf32> to vector<1x8x128xf32>
    %138 = vector.shape_cast %137 : vector<1x8x128xf32> to vector<8x128xf32>
    %cst_27 = arith.constant dense<0.000000e+00> : vector<8x128xf32>
    %139 = tpu.matmul %116, %1, %cst_27 {dimension_numbers = #tpu.dot_dimension_numbers<[1], [0], [0], [1], [0, 0, 1, 1], [], []>} : vector<8x32xf32>, vector<32x128xf32>, vector<8x128xf32> -> vector<8x128xf32>
    %140 = arith.addf %138, %139 : vector<8x128xf32>
    %141 = vector.extract_strided_slice %140 {offsets = [0, 0], sizes = [8, 96], strides = [1, 1]} : vector<8x128xf32> to vector<8x96xf32>
    %142 = arith.negf %141 : vector<8x96xf32>
    %143 = math.exp %142 : vector<8x96xf32>
    %cst_28 = arith.constant 1.000000e+00 : f32
    %144 = vector.broadcast %cst_28 : f32 to vector<8x96xf32>
    %145 = arith.addf %144, %143 : vector<8x96xf32>
    %146 = arith.divf %144, %145 : vector<8x96xf32>
    %147 = vector.extract_strided_slice %140 {offsets = [0, 96], sizes = [8, 32], strides = [1, 1]} : vector<8x128xf32> to vector<8x32xf32>
    %148 = math.tanh %147 : vector<8x32xf32>
    %149 = vector.extract_strided_slice %146 {offsets = [0, 0], sizes = [8, 32], strides = [1, 1]} : vector<8x96xf32> to vector<8x32xf32>
    %150 = vector.extract_strided_slice %146 {offsets = [0, 32], sizes = [8, 32], strides = [1, 1]} : vector<8x96xf32> to vector<8x32xf32>
    %151 = vector.extract_strided_slice %146 {offsets = [0, 64], sizes = [8, 32], strides = [1, 1]} : vector<8x96xf32> to vector<8x32xf32>
    %152 = arith.mulf %150, %114 : vector<8x32xf32>
    %153 = arith.mulf %149, %148 : vector<8x32xf32>
    %154 = arith.addf %152, %153 : vector<8x32xf32>
    %155 = math.tanh %154 : vector<8x32xf32>
    %156 = arith.mulf %151, %155 : vector<8x32xf32>
    %157 = tpu.concatenate %156, %136 in 1 : vector<8x32xf32>, vector<8x32xf32> -> vector<8x64xf32>
    %cst_29 = arith.constant dense<0.000000e+00> : vector<8x128xf32>
    %158 = tpu.matmul %157, %3, %cst_29 {dimension_numbers = #tpu.dot_dimension_numbers<[1], [0], [0], [1], [0, 0, 1, 1], [], []>} : vector<8x64xf32>, vector<64x128xf32>, vector<8x128xf32> -> vector<8x128xf32>
    %159 = vector.broadcast %4 : vector<1x128xf32> to vector<8x128xf32>
    %160 = arith.addf %158, %159 : vector<8x128xf32>
    %161 = vector.extract_strided_slice %160 {offsets = [0, 0], sizes = [8, 96], strides = [1, 1]} : vector<8x128xf32> to vector<8x96xf32>
    %162 = arith.negf %161 : vector<8x96xf32>
    %163 = math.exp %162 : vector<8x96xf32>
    %cst_30 = arith.constant 1.000000e+00 : f32
    %164 = vector.broadcast %cst_30 : f32 to vector<8x96xf32>
    %165 = arith.addf %164, %163 : vector<8x96xf32>
    %166 = arith.divf %164, %165 : vector<8x96xf32>
    %167 = vector.extract_strided_slice %160 {offsets = [0, 96], sizes = [8, 32], strides = [1, 1]} : vector<8x128xf32> to vector<8x32xf32>
    %168 = math.tanh %167 : vector<8x32xf32>
    %169 = vector.extract_strided_slice %166 {offsets = [0, 0], sizes = [8, 32], strides = [1, 1]} : vector<8x96xf32> to vector<8x32xf32>
    %170 = vector.extract_strided_slice %166 {offsets = [0, 32], sizes = [8, 32], strides = [1, 1]} : vector<8x96xf32> to vector<8x32xf32>
    %171 = vector.extract_strided_slice %166 {offsets = [0, 64], sizes = [8, 32], strides = [1, 1]} : vector<8x96xf32> to vector<8x32xf32>
    %172 = arith.mulf %170, %134 : vector<8x32xf32>
    %173 = arith.mulf %169, %168 : vector<8x32xf32>
    %174 = arith.addf %172, %173 : vector<8x32xf32>
    %175 = math.tanh %174 : vector<8x32xf32>
    %176 = arith.mulf %171, %175 : vector<8x32xf32>
    %177 = vector.extract_strided_slice %12 {offsets = [4, 0, 0], sizes = [1, 8, 128], strides = [1, 1, 1]} : vector<8x8x128xf32> to vector<1x8x128xf32>
    %178 = vector.shape_cast %177 : vector<1x8x128xf32> to vector<8x128xf32>
    %cst_31 = arith.constant dense<0.000000e+00> : vector<8x128xf32>
    %179 = tpu.matmul %156, %1, %cst_31 {dimension_numbers = #tpu.dot_dimension_numbers<[1], [0], [0], [1], [0, 0, 1, 1], [], []>} : vector<8x32xf32>, vector<32x128xf32>, vector<8x128xf32> -> vector<8x128xf32>
    %180 = arith.addf %178, %179 : vector<8x128xf32>
    %181 = vector.extract_strided_slice %180 {offsets = [0, 0], sizes = [8, 96], strides = [1, 1]} : vector<8x128xf32> to vector<8x96xf32>
    %182 = arith.negf %181 : vector<8x96xf32>
    %183 = math.exp %182 : vector<8x96xf32>
    %cst_32 = arith.constant 1.000000e+00 : f32
    %184 = vector.broadcast %cst_32 : f32 to vector<8x96xf32>
    %185 = arith.addf %184, %183 : vector<8x96xf32>
    %186 = arith.divf %184, %185 : vector<8x96xf32>
    %187 = vector.extract_strided_slice %180 {offsets = [0, 96], sizes = [8, 32], strides = [1, 1]} : vector<8x128xf32> to vector<8x32xf32>
    %188 = math.tanh %187 : vector<8x32xf32>
    %189 = vector.extract_strided_slice %186 {offsets = [0, 0], sizes = [8, 32], strides = [1, 1]} : vector<8x96xf32> to vector<8x32xf32>
    %190 = vector.extract_strided_slice %186 {offsets = [0, 32], sizes = [8, 32], strides = [1, 1]} : vector<8x96xf32> to vector<8x32xf32>
    %191 = vector.extract_strided_slice %186 {offsets = [0, 64], sizes = [8, 32], strides = [1, 1]} : vector<8x96xf32> to vector<8x32xf32>
    %192 = arith.mulf %190, %154 : vector<8x32xf32>
    %193 = arith.mulf %189, %188 : vector<8x32xf32>
    %194 = arith.addf %192, %193 : vector<8x32xf32>
    %195 = math.tanh %194 : vector<8x32xf32>
    %196 = arith.mulf %191, %195 : vector<8x32xf32>
    %197 = tpu.concatenate %196, %176 in 1 : vector<8x32xf32>, vector<8x32xf32> -> vector<8x64xf32>
    %cst_33 = arith.constant dense<0.000000e+00> : vector<8x128xf32>
    %198 = tpu.matmul %197, %3, %cst_33 {dimension_numbers = #tpu.dot_dimension_numbers<[1], [0], [0], [1], [0, 0, 1, 1], [], []>} : vector<8x64xf32>, vector<64x128xf32>, vector<8x128xf32> -> vector<8x128xf32>
    %199 = vector.broadcast %4 : vector<1x128xf32> to vector<8x128xf32>
    %200 = arith.addf %198, %199 : vector<8x128xf32>
    %201 = vector.extract_strided_slice %200 {offsets = [0, 0], sizes = [8, 96], strides = [1, 1]} : vector<8x128xf32> to vector<8x96xf32>
    %202 = arith.negf %201 : vector<8x96xf32>
    %203 = math.exp %202 : vector<8x96xf32>
    %cst_34 = arith.constant 1.000000e+00 : f32
    %204 = vector.broadcast %cst_34 : f32 to vector<8x96xf32>
    %205 = arith.addf %204, %203 : vector<8x96xf32>
    %206 = arith.divf %204, %205 : vector<8x96xf32>
    %207 = vector.extract_strided_slice %200 {offsets = [0, 96], sizes = [8, 32], strides = [1, 1]} : vector<8x128xf32> to vector<8x32xf32>
    %208 = math.tanh %207 : vector<8x32xf32>
    %209 = vector.extract_strided_slice %206 {offsets = [0, 0], sizes = [8, 32], strides = [1, 1]} : vector<8x96xf32> to vector<8x32xf32>
    %210 = vector.extract_strided_slice %206 {offsets = [0, 32], sizes = [8, 32], strides = [1, 1]} : vector<8x96xf32> to vector<8x32xf32>
    %211 = vector.extract_strided_slice %206 {offsets = [0, 64], sizes = [8, 32], strides = [1, 1]} : vector<8x96xf32> to vector<8x32xf32>
    %212 = arith.mulf %210, %174 : vector<8x32xf32>
    %213 = arith.mulf %209, %208 : vector<8x32xf32>
    %214 = arith.addf %212, %213 : vector<8x32xf32>
    %215 = math.tanh %214 : vector<8x32xf32>
    %216 = arith.mulf %211, %215 : vector<8x32xf32>
    %217 = vector.extract_strided_slice %12 {offsets = [5, 0, 0], sizes = [1, 8, 128], strides = [1, 1, 1]} : vector<8x8x128xf32> to vector<1x8x128xf32>
    %218 = vector.shape_cast %217 : vector<1x8x128xf32> to vector<8x128xf32>
    %cst_35 = arith.constant dense<0.000000e+00> : vector<8x128xf32>
    %219 = tpu.matmul %196, %1, %cst_35 {dimension_numbers = #tpu.dot_dimension_numbers<[1], [0], [0], [1], [0, 0, 1, 1], [], []>} : vector<8x32xf32>, vector<32x128xf32>, vector<8x128xf32> -> vector<8x128xf32>
    %220 = arith.addf %218, %219 : vector<8x128xf32>
    %221 = vector.extract_strided_slice %220 {offsets = [0, 0], sizes = [8, 96], strides = [1, 1]} : vector<8x128xf32> to vector<8x96xf32>
    %222 = arith.negf %221 : vector<8x96xf32>
    %223 = math.exp %222 : vector<8x96xf32>
    %cst_36 = arith.constant 1.000000e+00 : f32
    %224 = vector.broadcast %cst_36 : f32 to vector<8x96xf32>
    %225 = arith.addf %224, %223 : vector<8x96xf32>
    %226 = arith.divf %224, %225 : vector<8x96xf32>
    %227 = vector.extract_strided_slice %220 {offsets = [0, 96], sizes = [8, 32], strides = [1, 1]} : vector<8x128xf32> to vector<8x32xf32>
    %228 = math.tanh %227 : vector<8x32xf32>
    %229 = vector.extract_strided_slice %226 {offsets = [0, 0], sizes = [8, 32], strides = [1, 1]} : vector<8x96xf32> to vector<8x32xf32>
    %230 = vector.extract_strided_slice %226 {offsets = [0, 32], sizes = [8, 32], strides = [1, 1]} : vector<8x96xf32> to vector<8x32xf32>
    %231 = vector.extract_strided_slice %226 {offsets = [0, 64], sizes = [8, 32], strides = [1, 1]} : vector<8x96xf32> to vector<8x32xf32>
    %232 = arith.mulf %230, %194 : vector<8x32xf32>
    %233 = arith.mulf %229, %228 : vector<8x32xf32>
    %234 = arith.addf %232, %233 : vector<8x32xf32>
    %235 = math.tanh %234 : vector<8x32xf32>
    %236 = arith.mulf %231, %235 : vector<8x32xf32>
    %237 = tpu.concatenate %236, %216 in 1 : vector<8x32xf32>, vector<8x32xf32> -> vector<8x64xf32>
    %cst_37 = arith.constant dense<0.000000e+00> : vector<8x128xf32>
    %238 = tpu.matmul %237, %3, %cst_37 {dimension_numbers = #tpu.dot_dimension_numbers<[1], [0], [0], [1], [0, 0, 1, 1], [], []>} : vector<8x64xf32>, vector<64x128xf32>, vector<8x128xf32> -> vector<8x128xf32>
    %239 = vector.broadcast %4 : vector<1x128xf32> to vector<8x128xf32>
    %240 = arith.addf %238, %239 : vector<8x128xf32>
    %241 = vector.extract_strided_slice %240 {offsets = [0, 0], sizes = [8, 96], strides = [1, 1]} : vector<8x128xf32> to vector<8x96xf32>
    %242 = arith.negf %241 : vector<8x96xf32>
    %243 = math.exp %242 : vector<8x96xf32>
    %cst_38 = arith.constant 1.000000e+00 : f32
    %244 = vector.broadcast %cst_38 : f32 to vector<8x96xf32>
    %245 = arith.addf %244, %243 : vector<8x96xf32>
    %246 = arith.divf %244, %245 : vector<8x96xf32>
    %247 = vector.extract_strided_slice %240 {offsets = [0, 96], sizes = [8, 32], strides = [1, 1]} : vector<8x128xf32> to vector<8x32xf32>
    %248 = math.tanh %247 : vector<8x32xf32>
    %249 = vector.extract_strided_slice %246 {offsets = [0, 0], sizes = [8, 32], strides = [1, 1]} : vector<8x96xf32> to vector<8x32xf32>
    %250 = vector.extract_strided_slice %246 {offsets = [0, 32], sizes = [8, 32], strides = [1, 1]} : vector<8x96xf32> to vector<8x32xf32>
    %251 = vector.extract_strided_slice %246 {offsets = [0, 64], sizes = [8, 32], strides = [1, 1]} : vector<8x96xf32> to vector<8x32xf32>
    %252 = arith.mulf %250, %214 : vector<8x32xf32>
    %253 = arith.mulf %249, %248 : vector<8x32xf32>
    %254 = arith.addf %252, %253 : vector<8x32xf32>
    %255 = math.tanh %254 : vector<8x32xf32>
    %256 = arith.mulf %251, %255 : vector<8x32xf32>
    %257 = vector.extract_strided_slice %12 {offsets = [6, 0, 0], sizes = [1, 8, 128], strides = [1, 1, 1]} : vector<8x8x128xf32> to vector<1x8x128xf32>
    %258 = vector.shape_cast %257 : vector<1x8x128xf32> to vector<8x128xf32>
    %cst_39 = arith.constant dense<0.000000e+00> : vector<8x128xf32>
    %259 = tpu.matmul %236, %1, %cst_39 {dimension_numbers = #tpu.dot_dimension_numbers<[1], [0], [0], [1], [0, 0, 1, 1], [], []>} : vector<8x32xf32>, vector<32x128xf32>, vector<8x128xf32> -> vector<8x128xf32>
    %260 = arith.addf %258, %259 : vector<8x128xf32>
    %261 = vector.extract_strided_slice %260 {offsets = [0, 0], sizes = [8, 96], strides = [1, 1]} : vector<8x128xf32> to vector<8x96xf32>
    %262 = arith.negf %261 : vector<8x96xf32>
    %263 = math.exp %262 : vector<8x96xf32>
    %cst_40 = arith.constant 1.000000e+00 : f32
    %264 = vector.broadcast %cst_40 : f32 to vector<8x96xf32>
    %265 = arith.addf %264, %263 : vector<8x96xf32>
    %266 = arith.divf %264, %265 : vector<8x96xf32>
    %267 = vector.extract_strided_slice %260 {offsets = [0, 96], sizes = [8, 32], strides = [1, 1]} : vector<8x128xf32> to vector<8x32xf32>
    %268 = math.tanh %267 : vector<8x32xf32>
    %269 = vector.extract_strided_slice %266 {offsets = [0, 0], sizes = [8, 32], strides = [1, 1]} : vector<8x96xf32> to vector<8x32xf32>
    %270 = vector.extract_strided_slice %266 {offsets = [0, 32], sizes = [8, 32], strides = [1, 1]} : vector<8x96xf32> to vector<8x32xf32>
    %271 = vector.extract_strided_slice %266 {offsets = [0, 64], sizes = [8, 32], strides = [1, 1]} : vector<8x96xf32> to vector<8x32xf32>
    %272 = arith.mulf %270, %234 : vector<8x32xf32>
    %273 = arith.mulf %269, %268 : vector<8x32xf32>
    %274 = arith.addf %272, %273 : vector<8x32xf32>
    %275 = math.tanh %274 : vector<8x32xf32>
    %276 = arith.mulf %271, %275 : vector<8x32xf32>
    %277 = tpu.concatenate %276, %256 in 1 : vector<8x32xf32>, vector<8x32xf32> -> vector<8x64xf32>
    %cst_41 = arith.constant dense<0.000000e+00> : vector<8x128xf32>
    %278 = tpu.matmul %277, %3, %cst_41 {dimension_numbers = #tpu.dot_dimension_numbers<[1], [0], [0], [1], [0, 0, 1, 1], [], []>} : vector<8x64xf32>, vector<64x128xf32>, vector<8x128xf32> -> vector<8x128xf32>
    %279 = vector.broadcast %4 : vector<1x128xf32> to vector<8x128xf32>
    %280 = arith.addf %278, %279 : vector<8x128xf32>
    %281 = vector.extract_strided_slice %280 {offsets = [0, 0], sizes = [8, 96], strides = [1, 1]} : vector<8x128xf32> to vector<8x96xf32>
    %282 = arith.negf %281 : vector<8x96xf32>
    %283 = math.exp %282 : vector<8x96xf32>
    %cst_42 = arith.constant 1.000000e+00 : f32
    %284 = vector.broadcast %cst_42 : f32 to vector<8x96xf32>
    %285 = arith.addf %284, %283 : vector<8x96xf32>
    %286 = arith.divf %284, %285 : vector<8x96xf32>
    %287 = vector.extract_strided_slice %280 {offsets = [0, 96], sizes = [8, 32], strides = [1, 1]} : vector<8x128xf32> to vector<8x32xf32>
    %288 = math.tanh %287 : vector<8x32xf32>
    %289 = vector.extract_strided_slice %286 {offsets = [0, 0], sizes = [8, 32], strides = [1, 1]} : vector<8x96xf32> to vector<8x32xf32>
    %290 = vector.extract_strided_slice %286 {offsets = [0, 32], sizes = [8, 32], strides = [1, 1]} : vector<8x96xf32> to vector<8x32xf32>
    %291 = vector.extract_strided_slice %286 {offsets = [0, 64], sizes = [8, 32], strides = [1, 1]} : vector<8x96xf32> to vector<8x32xf32>
    %292 = arith.mulf %290, %254 : vector<8x32xf32>
    %293 = arith.mulf %289, %288 : vector<8x32xf32>
    %294 = arith.addf %292, %293 : vector<8x32xf32>
    %295 = math.tanh %294 : vector<8x32xf32>
    %296 = arith.mulf %291, %295 : vector<8x32xf32>
    %297 = vector.extract_strided_slice %12 {offsets = [7, 0, 0], sizes = [1, 8, 128], strides = [1, 1, 1]} : vector<8x8x128xf32> to vector<1x8x128xf32>
    %298 = vector.shape_cast %297 : vector<1x8x128xf32> to vector<8x128xf32>
    %cst_43 = arith.constant dense<0.000000e+00> : vector<8x128xf32>
    %299 = tpu.matmul %276, %1, %cst_43 {dimension_numbers = #tpu.dot_dimension_numbers<[1], [0], [0], [1], [0, 0, 1, 1], [], []>} : vector<8x32xf32>, vector<32x128xf32>, vector<8x128xf32> -> vector<8x128xf32>
    %300 = arith.addf %298, %299 : vector<8x128xf32>
    %301 = vector.extract_strided_slice %300 {offsets = [0, 0], sizes = [8, 96], strides = [1, 1]} : vector<8x128xf32> to vector<8x96xf32>
    %302 = arith.negf %301 : vector<8x96xf32>
    %303 = math.exp %302 : vector<8x96xf32>
    %cst_44 = arith.constant 1.000000e+00 : f32
    %304 = vector.broadcast %cst_44 : f32 to vector<8x96xf32>
    %305 = arith.addf %304, %303 : vector<8x96xf32>
    %306 = arith.divf %304, %305 : vector<8x96xf32>
    %307 = vector.extract_strided_slice %300 {offsets = [0, 96], sizes = [8, 32], strides = [1, 1]} : vector<8x128xf32> to vector<8x32xf32>
    %308 = math.tanh %307 : vector<8x32xf32>
    %309 = vector.extract_strided_slice %306 {offsets = [0, 0], sizes = [8, 32], strides = [1, 1]} : vector<8x96xf32> to vector<8x32xf32>
    %310 = vector.extract_strided_slice %306 {offsets = [0, 32], sizes = [8, 32], strides = [1, 1]} : vector<8x96xf32> to vector<8x32xf32>
    %311 = vector.extract_strided_slice %306 {offsets = [0, 64], sizes = [8, 32], strides = [1, 1]} : vector<8x96xf32> to vector<8x32xf32>
    %312 = arith.mulf %310, %274 : vector<8x32xf32>
    %313 = arith.mulf %309, %308 : vector<8x32xf32>
    %314 = arith.addf %312, %313 : vector<8x32xf32>
    %315 = math.tanh %314 : vector<8x32xf32>
    %316 = arith.mulf %311, %315 : vector<8x32xf32>
    %317 = tpu.concatenate %316, %296 in 1 : vector<8x32xf32>, vector<8x32xf32> -> vector<8x64xf32>
    %cst_45 = arith.constant dense<0.000000e+00> : vector<8x128xf32>
    %318 = tpu.matmul %317, %3, %cst_45 {dimension_numbers = #tpu.dot_dimension_numbers<[1], [0], [0], [1], [0, 0, 1, 1], [], []>} : vector<8x64xf32>, vector<64x128xf32>, vector<8x128xf32> -> vector<8x128xf32>
    %319 = vector.broadcast %4 : vector<1x128xf32> to vector<8x128xf32>
    %320 = arith.addf %318, %319 : vector<8x128xf32>
    %321 = vector.extract_strided_slice %320 {offsets = [0, 0], sizes = [8, 96], strides = [1, 1]} : vector<8x128xf32> to vector<8x96xf32>
    %322 = arith.negf %321 : vector<8x96xf32>
    %323 = math.exp %322 : vector<8x96xf32>
    %cst_46 = arith.constant 1.000000e+00 : f32
    %324 = vector.broadcast %cst_46 : f32 to vector<8x96xf32>
    %325 = arith.addf %324, %323 : vector<8x96xf32>
    %326 = arith.divf %324, %325 : vector<8x96xf32>
    %327 = vector.extract_strided_slice %320 {offsets = [0, 96], sizes = [8, 32], strides = [1, 1]} : vector<8x128xf32> to vector<8x32xf32>
    %328 = math.tanh %327 : vector<8x32xf32>
    %329 = vector.extract_strided_slice %326 {offsets = [0, 0], sizes = [8, 32], strides = [1, 1]} : vector<8x96xf32> to vector<8x32xf32>
    %330 = vector.extract_strided_slice %326 {offsets = [0, 32], sizes = [8, 32], strides = [1, 1]} : vector<8x96xf32> to vector<8x32xf32>
    %331 = vector.extract_strided_slice %326 {offsets = [0, 64], sizes = [8, 32], strides = [1, 1]} : vector<8x96xf32> to vector<8x32xf32>
    %332 = arith.mulf %330, %294 : vector<8x32xf32>
    %333 = arith.mulf %329, %328 : vector<8x32xf32>
    %334 = arith.addf %332, %333 : vector<8x32xf32>
    %335 = math.tanh %334 : vector<8x32xf32>
    %336 = arith.mulf %331, %335 : vector<8x32xf32>
    %c0_47 = arith.constant 0 : index
    %c0_48 = arith.constant 0 : index
    %337 = vector.load %arg6[%c0_47, %c0_48] : memref<1x32xf32, #tpu.memory_space<vmem>>, vector<1x32xf32>
    %338 = vector.broadcast %337 : vector<1x32xf32> to vector<8x32xf32>
    %339 = arith.mulf %336, %338 : vector<8x32xf32>
    %cst_49 = arith.constant dense<0.000000e+00> : vector<8xf32>
    %340 = vector.multi_reduction <add>, %339, %cst_49 [1] : vector<8x32xf32> to vector<8xf32>
    %341 = vector.shape_cast %340 : vector<8xf32> to vector<8x1xf32>
    %c0_50 = arith.constant 0 : index
    %c0_51 = arith.constant 0 : index
    %342 = vector.load %arg7[%c0_50, %c0_51] : memref<1x1xf32, #tpu.memory_space<vmem>>, vector<1x1xf32>
    %343 = vector.broadcast %342 : vector<1x1xf32> to vector<8x1xf32>
    %344 = arith.addf %341, %343 : vector<8x1xf32>
    %c0_52 = arith.constant 0 : index
    %c0_53 = arith.constant 0 : index
    %345 = vector.load %arg8[%c0_52, %c0_53] : memref<8x1xf32, #tpu.memory_space<vmem>>, vector<8x1xf32>
    tpu.vector_store %arg8[%c0_52, %c0_53], %344 {strides = array<i32>} : memref<8x1xf32, #tpu.memory_space<vmem>>, vector<8x1xf32>,
    return
  }
}

</mosaic_0001>

<llo_original>
// kernel: tpu_custom_call.1
$region0: #{tpu_custom_call.1}
  #allocation0 [shape = 'u32[]', space=smem, size = 0x4, offset = 0x4, fixed_abs, tag = 'smem constant byte address 0x4 - core index']
  #allocation1 [shape = 'u32[72,128]{1,0:T(1,128)}', space=vmem, size = 0x9000, scoped, tag = 'internal scratch']
  #allocation2 [shape = 'f32[1,1]{1,0:T(1,128)S(1)}', space=vmem, size = 0x200, scoped, tag = 'scoped memory for tpu_custom_call.1']
  %s0 = inlined_call_operand.vmem [shape: f32[8,8,1], index: 0, kind: input, shape index: {}]
  %s1 = inlined_call_operand.vmem [shape: f32[1,128], index: 1, kind: input, shape index: {}]
  %s2 = inlined_call_operand.hbm [shape: f32[32,128], index: 2, kind: input, shape index: {}]
  %s3 = inlined_call_operand.vmem [shape: f32[1,128], index: 3, kind: input, shape index: {}]
  %s4 = inlined_call_operand.vmem [shape: f32[64,128], index: 4, kind: input, shape index: {}]
  %s5 = inlined_call_operand.vmem [shape: f32[1,128], index: 5, kind: input, shape index: {}]
  %s6 = inlined_call_operand.vmem [shape: f32[1,32], index: 6, kind: input, shape index: {}]
  %s7 = inlined_call_operand.<no memory space> [shape: f32[1,1], index: 7, kind: input, shape index: {}]
  %s8 = inlined_call_operand.vmem [shape: f32[8,1], index: 8, kind: output, shape index: {}]
  %s9 = sld [smem:[#allocation0]]
  $region46: #{tpu_custom_call.1} parent=0
    _
  %s11 = ssub.s32 1, %s9
  %s12 = scalar_select 0, %s11, %s9
  %v13 = vstv %s7
  %14 = vst [vmem:[#allocation2] sm:$0x1] %v13
  $region1: #{tpu_custom_call.1} parent=0
    #allocation3 [shape = 'u8[16384]{0}', space=vmem, size = 0x4000, scoped, tag = 'input window, operand 2, single buffered']
    #allocation4 [shape = 's32[1]{0}', space=sflag, size = 0x4, scoped, tag = 'scoped memory for tpu_custom_call.1']
    %15 = vsyncpa [#allocation4], 0
    // Predicated region
    $region2: #{tpu_custom_call.1} parent=1 // pred_check
      _
    $region3: #{tpu_custom_call.1} parent=1 // pred_check_branch
      %17 = sbr.rel (0) target = $region5
    $region4: #{tpu_custom_call.1} parent=1 // pred_region
      _
    $region5: #{tpu_custom_call.1} parent=1 // pred_fallthru
      _
    // Predicated region
    $region6: #{tpu_custom_call.1} parent=1 // pred_check
      _
    $region7: #{tpu_custom_call.1} parent=1 // pred_check_branch
      %19 = sbr.rel (0) target = $region9
    $region8: #{tpu_custom_call.1} parent=1 // pred_region
      _
    $region9: #{tpu_custom_call.1} parent=1 // pred_fallthru
      _
    // Predicated region
    $region10: #{tpu_custom_call.1} parent=1 // pred_check
      _
    $region11: #{tpu_custom_call.1} parent=1 // pred_check_branch
      %21 = sbr.rel (0) target = $region13
    $region12: #{tpu_custom_call.1} parent=1 // pred_region
      %23 = vsyncadd [#allocation4], 0
      %s24 = sshll.u32 %s2, 4
      %s25 = int_to_ptr.hbm [resolvable:$true] %s24
      %s26 = sshll.u32 [#allocation3], 4
      %s27 = int_to_ptr.vmem [resolvable:$true] %s26
      %32 = dma.hbm_to_vmem [thread:$0]  %s25, 512, %s27, [#allocation4], 128, 128, 8
    $region13: #{tpu_custom_call.1} parent=1 // pred_fallthru
      _
    // Predicated region
    $region14: #{tpu_custom_call.1} parent=1 // pred_check
      _
    $region15: #{tpu_custom_call.1} parent=1 // pred_check_branch
      %34 = sbr.rel (0) target = $region17
    $region16: #{tpu_custom_call.1} parent=1 // pred_region
      _
    $region17: #{tpu_custom_call.1} parent=1 // pred_fallthru
      _
    // Predicated region
    $region18: #{tpu_custom_call.1} parent=1 // pred_check
      _
    $region19: #{tpu_custom_call.1} parent=1 // pred_check_branch
      %36 = sbr.rel (0) target = $region21
    $region20: #{tpu_custom_call.1} parent=1 // pred_region
      _
    $region21: #{tpu_custom_call.1} parent=1 // pred_fallthru
      _
    // Predicated region
    $region22: #{tpu_custom_call.1} parent=1 // pred_check
      _
    $region23: #{tpu_custom_call.1} parent=1 // pred_check_branch
      %38 = sbr.rel (0) target = $region25
    $region24: #{tpu_custom_call.1} parent=1 // pred_region
      _
    $region25: #{tpu_custom_call.1} parent=1 // pred_fallthru
      _
    // Predicated region
    $region26: #{tpu_custom_call.1} parent=1 // pred_check
      _
    $region27: #{tpu_custom_call.1} parent=1 // pred_check_branch
      %40 = sbr.rel (0) target = $region29
    $region28: #{tpu_custom_call.1} parent=1 // pred_region
      _
    $region29: #{tpu_custom_call.1} parent=1 // pred_fallthru
      _
    // Predicated region
    $region30: #{tpu_custom_call.1} parent=1 // pred_check
      _
    $region31: #{tpu_custom_call.1} parent=1 // pred_check_branch
      %42 = sbr.rel (0) target = $region33
    $region32: #{tpu_custom_call.1} parent=1 // pred_region
      _
    $region33: #{tpu_custom_call.1} parent=1 // pred_fallthru
      _
    // Predicated region
    $region34: #{tpu_custom_call.1} parent=1 // pred_check
      _
    $region35: #{tpu_custom_call.1} parent=1 // pred_check_branch
      %44 = sbr.rel (0) target = $region37
    $region36: #{tpu_custom_call.1} parent=1 // pred_region
      %46 = dma.done [#allocation4], 512
    $region37: #{tpu_custom_call.1} parent=1 // pred_fallthru
      _
    %v47 = vld [vmem:[%s1] sm:$0x1]
    %v48 = vld [vmem:[#allocation3] sm:$0xff]
    %v49 = vld [vmem:[#allocation3 + $0x8] sm:$0xff]
    %v50 = vld [vmem:[#allocation3 + $0x10] sm:$0xff]
    %v51 = vld [vmem:[#allocation3 + $0x18] sm:$0xff]
    %v52 = vld [vmem:[%s3] sm:$0x1]
    %v53 = vld [vmem:[%s4] sm:$0xff]
    %v54 = vld [vmem:[%s4 + $0x8] sm:$0xff]
    %v55 = vld [vmem:[%s4 + $0x10] sm:$0xff]
    %v56 = vld [vmem:[%s4 + $0x18] sm:$0xff]
    %v57 = vld [vmem:[%s4 + $0x20] sm:$0xff]
    %v58 = vld [vmem:[%s4 + $0x28] sm:$0xff]
    %v59 = vld [vmem:[%s4 + $0x30] sm:$0xff]
    %v60 = vld [vmem:[%s4 + $0x38] sm:$0xff]
    %v61 = vld [vmem:[%s5] sm:$0x1]
    %v62 = vld [vmem:[%s0] sm:$0xff]
    %v63 = vld [vmem:[%s0 + $0x8] sm:$0xff]
    %v64 = vld [vmem:[%s0 + $0x10] sm:$0xff]
    %v65 = vld [vmem:[%s0 + $0x18] sm:$0xff]
    %v66 = vld [vmem:[%s0 + $0x20] sm:$0xff]
    %v67 = vld [vmem:[%s0 + $0x28] sm:$0xff]
    %v68 = vld [vmem:[%s0 + $0x30] sm:$0xff]
    %v69 = vld [vmem:[%s0 + $0x38] sm:$0xff]
    %71 = vset.pattern.permute.xlu0 0
    %72 = vperm.xlu0 %71, %v62
    %v73 = vpop.permute.xlu0 %72
    %76 = vset.pattern.permute.xlu0 0
    %77 = vperm.xlu0 %76, %v63
    %v78 = vpop.permute.xlu0 %77
    %81 = vset.pattern.permute.xlu0 0
    %82 = vperm.xlu0 %81, %v64
    %v83 = vpop.permute.xlu0 %82
    %86 = vset.pattern.permute.xlu0 0
    %87 = vperm.xlu0 %86, %v65
    %v88 = vpop.permute.xlu0 %87
    %91 = vset.pattern.permute.xlu0 0
    %92 = vperm.xlu0 %91, %v66
    %v93 = vpop.permute.xlu0 %92
    %96 = vset.pattern.permute.xlu0 0
    %97 = vperm.xlu0 %96, %v67
    %v98 = vpop.permute.xlu0 %97
    %101 = vset.pattern.permute.xlu0 0
    %102 = vperm.xlu0 %101, %v68
    %v103 = vpop.permute.xlu0 %102
    %106 = vset.pattern.permute.xlu0 0
    %107 = vperm.xlu0 %106, %v69
    %v108 = vpop.permute.xlu0 %107
    %v111 = vperm.slane %v47, 0
    %v113 = vmul.f32 %v73, %v111
    %v114 = vmul.f32 %v78, %v111
    %v115 = vmul.f32 %v83, %v111
    %v116 = vmul.f32 %v88, %v111
    %v117 = vmul.f32 %v93, %v111
    %v118 = vmul.f32 %v98, %v111
    %v119 = vmul.f32 %v103, %v111
    %v120 = vmul.f32 %v108, %v111
    %v122 = vperm.slane %v52, 0
    %v124 = vadd.f32 %v113, %v122
    %v125 = vadd.f32 %v114, %v122
    %v126 = vadd.f32 %v115, %v122
    %v127 = vadd.f32 %v116, %v122
    %v128 = vadd.f32 %v117, %v122
    %v129 = vadd.f32 %v118, %v122
    %v130 = vadd.f32 %v119, %v122
    %v131 = vadd.f32 %v120, %v122
    %vm132 = vcmask 261120
    %v134 = vsel %vm132, 0.0, 0
    %136 = vmatpush.msra.mxu0 0.0
    %137 = vmatpush.msra.mxu0 0.0
    %138 = vmatpush.msra.mxu0 0.0
    %139 = vmatpush.msra.mxu0 0.0
    %140 = vmatpush.msra.mxu0 0.0
    %141 = vmatpush.msra.mxu0 0.0
    %142 = vmatpush.msra.mxu0 0.0
    %143 = vmatpush.msra.mxu0 0.0
    %144 = vmatpush.msra.mxu0 0.0
    %145 = vmatpush.msra.mxu0 0.0
    %146 = vmatpush.msra.mxu0 0.0
    %147 = vmatpush.msra.mxu0 0.0
    %148 = vmatpush.msra.mxu0 %v51
    %149 = vmatpush.msra.mxu0 %v50
    %150 = vmatpush.msra.mxu0 %v49
    %151 = vmatpush.msra.mxu0 %v48
    %152 = vmatmul.f32.gmra.mxu0 %v134
    %v153 = vpop.f32.mrf.mxu0
    %v154 = vadd.f32 0.0, %v153
    %155 = vdwg.mxu0
    %v156 = vadd.f32 %v124, %v154
    %v157 = vxor.u32 %v156, 2147483648
    %v158 = vmul.f32 %v157, 1.442695
    %v159 = vpow.pop %v158
    %v160 = vadd.f32 %v159, 1.0
    %v161 = vrcp.pop %v160
    %v162 = vmul.f32 %v160, %v161
    %v163 = vsub.f32 1.0, %v162
    %v164 = vmul.f32 %v161, %v163
    %v165 = vadd.f32 %v161, %v164
    %vm166 = vweird.f32 %v160
    %vm167 = vweird.f32 %v161
    %vm168 = vmor %vm166, %vm167
    %v169 = vsel %vm168, %v161, %v165
    %v170 = vand.u32 2147483647, %v160
    %vm171 = vcmp.eq.f32.partialorder %v170, 8.507059e+37
    %v172 = vand.u32 %v160, 2147483648
    %v173 = vor.u32 1.1754944e-38, %v172
    %v174 = vsel %vm171, %v173, %v169
    %v175 = vmul.f32 1.0, %v174
    %v176 = vtanh.pop %v156
    %v177 = vmul.f32 %v175, 0.0
    %179 = vrot.lane.b32.xlu0 %v176, 32
    %v180 = vpop.permute.xlu0 %179
    %v182 = vmul.f32 %v175, %v180
    %184 = vrot.lane.b32.xlu0 %v182, 32
    %v185 = vpop.permute.xlu0 %184
    %v187 = vadd.f32 %v177, %v185
    %v188 = vtanh.pop %v187
    %190 = vrot.lane.b32.xlu0 %v188, 32
    %v191 = vpop.permute.xlu0 %190
    %v193 = vmul.f32 %v175, %v191
    %195 = vrot.lane.b32.xlu0 %v193, 64
    %v196 = vpop.permute.xlu0 %195
    %v198 = vsel %vm132, %v196, 0.0
    %v200 = vperm.slane %v61, 0
    %vm202 = vcmask 523264
    %v204 = vsel %vm202, %v198, 0
    %206 = vmatpush.msra.mxu0 0.0
    %207 = vmatpush.msra.mxu0 0.0
    %208 = vmatpush.msra.mxu0 0.0
    %209 = vmatpush.msra.mxu0 0.0
    %210 = vmatpush.msra.mxu0 0.0
    %211 = vmatpush.msra.mxu0 0.0
    %212 = vmatpush.msra.mxu0 0.0
    %213 = vmatpush.msra.mxu0 0.0
    %214 = vmatpush.msra.mxu0 %v60
    %215 = vmatpush.msra.mxu0 %v59
    %216 = vmatpush.msra.mxu0 %v58
    %217 = vmatpush.msra.mxu0 %v57
    %218 = vmatpush.msra.mxu0 %v56
    %219 = vmatpush.msra.mxu0 %v55
    %220 = vmatpush.msra.mxu0 %v54
    %221 = vmatpush.msra.mxu0 %v53
    %222 = vmatmul.f32.gmra.mxu0 %v204
    %v223 = vpop.f32.mrf.mxu0
    %v224 = vadd.f32 %v200, %v223
    %225 = vdwg.mxu0
    %v226 = vxor.u32 %v224, 2147483648
    %v227 = vmul.f32 %v226, 1.442695
    %v228 = vpow.pop %v227
    %v229 = vadd.f32 %v228, 1.0
    %v230 = vrcp.pop %v229
    %v231 = vmul.f32 %v229, %v230
    %v232 = vsub.f32 1.0, %v231
    %v233 = vmul.f32 %v230, %v232
    %v234 = vadd.f32 %v230, %v233
    %vm235 = vweird.f32 %v229
    %vm236 = vweird.f32 %v230
    %vm237 = vmor %vm235, %vm236
    %v238 = vsel %vm237, %v230, %v234
    %v239 = vand.u32 2147483647, %v229
    %vm240 = vcmp.eq.f32.partialorder %v239, 8.507059e+37
    %v241 = vand.u32 %v229, 2147483648
    %v242 = vor.u32 1.1754944e-38, %v241
    %v243 = vsel %vm240, %v242, %v238
    %v244 = vmul.f32 1.0, %v243
    %v245 = vtanh.pop %v224
    %v246 = vmul.f32 %v244, 0.0
    %248 = vrot.lane.b32.xlu0 %v245, 32
    %v249 = vpop.permute.xlu0 %248
    %v251 = vmul.f32 %v244, %v249
    %253 = vrot.lane.b32.xlu0 %v251, 32
    %v254 = vpop.permute.xlu0 %253
    %v256 = vadd.f32 %v246, %v254
    %v257 = vtanh.pop %v256
    %259 = vrot.lane.b32.xlu0 %v257, 32
    %v260 = vpop.permute.xlu0 %259
    %v262 = vmul.f32 %v244, %v260
    %v263 = vsel %vm132, %v196, 0
    %265 = vmatpush.msra.mxu0 0.0
    %266 = vmatpush.msra.mxu0 0.0
    %267 = vmatpush.msra.mxu0 0.0
    %268 = vmatpush.msra.mxu0 0.0
    %269 = vmatpush.msra.mxu0 0.0
    %270 = vmatpush.msra.mxu0 0.0
    %271 = vmatpush.msra.mxu0 0.0
    %272 = vmatpush.msra.mxu0 0.0
    %273 = vmatpush.msra.mxu0 0.0
    %274 = vmatpush.msra.mxu0 0.0
    %275 = vmatpush.msra.mxu0 0.0
    %276 = vmatpush.msra.mxu0 0.0
    %277 = vmatpush.msra.mxu0 %v51
    %278 = vmatpush.msra.mxu0 %v50
    %279 = vmatpush.msra.mxu0 %v49
    %280 = vmatpush.msra.mxu0 %v48
    %281 = vmatmul.f32.gmra.mxu0 %v263
    %v282 = vpop.f32.mrf.mxu0
    %v283 = vadd.f32 0.0, %v282
    %284 = vdwg.mxu0
    %v285 = vadd.f32 %v125, %v283
    %v286 = vxor.u32 %v285, 2147483648
    %v287 = vmul.f32 %v286, 1.442695
    %v288 = vpow.pop %v287
    %v289 = vadd.f32 %v288, 1.0
    %v290 = vrcp.pop %v289
    %v291 = vmul.f32 %v289, %v290
    %v292 = vsub.f32 1.0, %v291
    %v293 = vmul.f32 %v290, %v292
    %v294 = vadd.f32 %v290, %v293
    %vm295 = vweird.f32 %v289
    %vm296 = vweird.f32 %v290
    %vm297 = vmor %vm295, %vm296
    %v298 = vsel %vm297, %v290, %v294
    %v299 = vand.u32 2147483647, %v289
    %vm300 = vcmp.eq.f32.partialorder %v299, 8.507059e+37
    %v301 = vand.u32 %v289, 2147483648
    %v302 = vor.u32 1.1754944e-38, %v301
    %v303 = vsel %vm300, %v302, %v298
    %v304 = vmul.f32 1.0, %v303
    %v305 = vtanh.pop %v285
    %v306 = vmul.f32 %v304, %v187
    %308 = vrot.lane.b32.xlu0 %v305, 32
    %v309 = vpop.permute.xlu0 %308
    %v311 = vmul.f32 %v304, %v309
    %313 = vrot.lane.b32.xlu0 %v311, 32
    %v314 = vpop.permute.xlu0 %313
    %v316 = vadd.f32 %v306, %v314
    %v317 = vtanh.pop %v316
    %319 = vrot.lane.b32.xlu0 %v317, 32
    %v320 = vpop.permute.xlu0 %319
    %v322 = vmul.f32 %v304, %v320
    %324 = vrot.lane.b32.xlu0 %v322, 64
    %v325 = vpop.permute.xlu0 %324
    %328 = vrot.lane.b32.xlu0 %v262, 96
    %v329 = vpop.permute.xlu0 %328
    %v331 = vsel %vm132, %v325, %v329
    %v333 = vsel %vm202, %v331, 0
    %335 = vmatpush.msra.mxu0 0.0
    %336 = vmatpush.msra.mxu0 0.0
    %337 = vmatpush.msra.mxu0 0.0
    %338 = vmatpush.msra.mxu0 0.0
    %339 = vmatpush.msra.mxu0 0.0
    %340 = vmatpush.msra.mxu0 0.0
    %341 = vmatpush.msra.mxu0 0.0
    %342 = vmatpush.msra.mxu0 0.0
    %343 = vmatpush.msra.mxu0 %v60
    %344 = vmatpush.msra.mxu0 %v59
    %345 = vmatpush.msra.mxu0 %v58
    %346 = vmatpush.msra.mxu0 %v57
    %347 = vmatpush.msra.mxu0 %v56
    %348 = vmatpush.msra.mxu0 %v55
    %349 = vmatpush.msra.mxu0 %v54
    %350 = vmatpush.msra.mxu0 %v53
    %351 = vmatmul.f32.gmra.mxu0 %v333
    %v352 = vpop.f32.mrf.mxu0
    %v353 = vadd.f32 %v200, %v352
    %354 = vdwg.mxu0
    %v355 = vxor.u32 %v353, 2147483648
    %v356 = vmul.f32 %v355, 1.442695
    %v357 = vpow.pop %v356
    %v358 = vadd.f32 %v357, 1.0
    %v359 = vrcp.pop %v358
    %v360 = vmul.f32 %v358, %v359
    %v361 = vsub.f32 1.0, %v360
    %v362 = vmul.f32 %v359, %v361
    %v363 = vadd.f32 %v359, %v362
    %vm364 = vweird.f32 %v358
    %vm365 = vweird.f32 %v359
    %vm366 = vmor %vm364, %vm365
    %v367 = vsel %vm366, %v359, %v363
    %v368 = vand.u32 2147483647, %v358
    %vm369 = vcmp.eq.f32.partialorder %v368, 8.507059e+37
    %v370 = vand.u32 %v358, 2147483648
    %v371 = vor.u32 1.1754944e-38, %v370
    %v372 = vsel %vm369, %v371, %v367
    %v373 = vmul.f32 1.0, %v372
    %v374 = vtanh.pop %v353
    %v375 = vmul.f32 %v373, %v256
    %377 = vrot.lane.b32.xlu0 %v374, 32
    %v378 = vpop.permute.xlu0 %377
    %v380 = vmul.f32 %v373, %v378
    %382 = vrot.lane.b32.xlu0 %v380, 32
    %v383 = vpop.permute.xlu0 %382
    %v385 = vadd.f32 %v375, %v383
    %v386 = vtanh.pop %v385
    %388 = vrot.lane.b32.xlu0 %v386, 32
    %v389 = vpop.permute.xlu0 %388
    %v391 = vmul.f32 %v373, %v389
    %v392 = vsel %vm132, %v325, 0
    %394 = vmatpush.msra.mxu0 0.0
    %395 = vmatpush.msra.mxu0 0.0
    %396 = vmatpush.msra.mxu0 0.0
    %397 = vmatpush.msra.mxu0 0.0
    %398 = vmatpush.msra.mxu0 0.0
    %399 = vmatpush.msra.mxu0 0.0
    %400 = vmatpush.msra.mxu0 0.0
    %401 = vmatpush.msra.mxu0 0.0
    %402 = vmatpush.msra.mxu0 0.0
    %403 = vmatpush.msra.mxu0 0.0
    %404 = vmatpush.msra.mxu0 0.0
    %405 = vmatpush.msra.mxu0 0.0
    %406 = vmatpush.msra.mxu0 %v51
    %407 = vmatpush.msra.mxu0 %v50
    %408 = vmatpush.msra.mxu0 %v49
    %409 = vmatpush.msra.mxu0 %v48
    %410 = vmatmul.f32.gmra.mxu0 %v392
    %v411 = vpop.f32.mrf.mxu0
    %v412 = vadd.f32 0.0, %v411
    %413 = vdwg.mxu0
    %v414 = vadd.f32 %v126, %v412
    %v415 = vxor.u32 %v414, 2147483648
    %v416 = vmul.f32 %v415, 1.442695
    %v417 = vpow.pop %v416
    %v418 = vadd.f32 %v417, 1.0
    %v419 = vrcp.pop %v418
    %v420 = vmul.f32 %v418, %v419
    %v421 = vsub.f32 1.0, %v420
    %v422 = vmul.f32 %v419, %v421
    %v423 = vadd.f32 %v419, %v422
    %vm424 = vweird.f32 %v418
    %vm425 = vweird.f32 %v419
    %vm426 = vmor %vm424, %vm425
    %v427 = vsel %vm426, %v419, %v423
    %v428 = vand.u32 2147483647, %v418
    %vm429 = vcmp.eq.f32.partialorder %v428, 8.507059e+37
    %v430 = vand.u32 %v418, 2147483648
    %v431 = vor.u32 1.1754944e-38, %v430
    %v432 = vsel %vm429, %v431, %v427
    %v433 = vmul.f32 1.0, %v432
    %v434 = vtanh.pop %v414
    %v435 = vmul.f32 %v433, %v316
    %437 = vrot.lane.b32.xlu0 %v434, 32
    %v438 = vpop.permute.xlu0 %437
    %v440 = vmul.f32 %v433, %v438
    %442 = vrot.lane.b32.xlu0 %v440, 32
    %v443 = vpop.permute.xlu0 %442
    %v445 = vadd.f32 %v435, %v443
    %v446 = vtanh.pop %v445
    %448 = vrot.lane.b32.xlu0 %v446, 32
    %v449 = vpop.permute.xlu0 %448
    %v451 = vmul.f32 %v433, %v449
    %453 = vrot.lane.b32.xlu0 %v451, 64
    %v454 = vpop.permute.xlu0 %453
    %457 = vrot.lane.b32.xlu0 %v391, 96
    %v458 = vpop.permute.xlu0 %457
    %v460 = vsel %vm132, %v454, %v458
    %v462 = vsel %vm202, %v460, 0
    %464 = vmatpush.msra.mxu0 0.0
    %465 = vmatpush.msra.mxu0 0.0
    %466 = vmatpush.msra.mxu0 0.0
    %467 = vmatpush.msra.mxu0 0.0
    %468 = vmatpush.msra.mxu0 0.0
    %469 = vmatpush.msra.mxu0 0.0
    %470 = vmatpush.msra.mxu0 0.0
    %471 = vmatpush.msra.mxu0 0.0
    %472 = vmatpush.msra.mxu0 %v60
    %473 = vmatpush.msra.mxu0 %v59
    %474 = vmatpush.msra.mxu0 %v58
    %475 = vmatpush.msra.mxu0 %v57
    %476 = vmatpush.msra.mxu0 %v56
    %477 = vmatpush.msra.mxu0 %v55
    %478 = vmatpush.msra.mxu0 %v54
    %479 = vmatpush.msra.mxu0 %v53
    %480 = vmatmul.f32.gmra.mxu0 %v462
    %v481 = vpop.f32.mrf.mxu0
    %v482 = vadd.f32 %v200, %v481
    %483 = vdwg.mxu0
    %v484 = vxor.u32 %v482, 2147483648
    %v485 = vmul.f32 %v484, 1.442695
    %v486 = vpow.pop %v485
    %v487 = vadd.f32 %v486, 1.0
    %v488 = vrcp.pop %v487
    %v489 = vmul.f32 %v487, %v488
    %v490 = vsub.f32 1.0, %v489
    %v491 = vmul.f32 %v488, %v490
    %v492 = vadd.f32 %v488, %v491
    %vm493 = vweird.f32 %v487
    %vm494 = vweird.f32 %v488
    %vm495 = vmor %vm493, %vm494
    %v496 = vsel %vm495, %v488, %v492
    %v497 = vand.u32 2147483647, %v487
    %vm498 = vcmp.eq.f32.partialorder %v497, 8.507059e+37
    %v499 = vand.u32 %v487, 2147483648
    %v500 = vor.u32 1.1754944e-38, %v499
    %v501 = vsel %vm498, %v500, %v496
    %v502 = vmul.f32 1.0, %v501
    %v503 = vtanh.pop %v482
    %v504 = vmul.f32 %v502, %v385
    %506 = vrot.lane.b32.xlu0 %v503, 32
    %v507 = vpop.permute.xlu0 %506
    %v509 = vmul.f32 %v502, %v507
    %511 = vrot.lane.b32.xlu0 %v509, 32
    %v512 = vpop.permute.xlu0 %511
    %v514 = vadd.f32 %v504, %v512
    %v515 = vtanh.pop %v514
    %517 = vrot.lane.b32.xlu0 %v515, 32
    %v518 = vpop.permute.xlu0 %517
    %v520 = vmul.f32 %v502, %v518
    %v521 = vsel %vm132, %v454, 0
    %523 = vmatpush.msra.mxu0 0.0
    %524 = vmatpush.msra.mxu0 0.0
    %525 = vmatpush.msra.mxu0 0.0
    %526 = vmatpush.msra.mxu0 0.0
    %527 = vmatpush.msra.mxu0 0.0
    %528 = vmatpush.msra.mxu0 0.0
    %529 = vmatpush.msra.mxu0 0.0
    %530 = vmatpush.msra.mxu0 0.0
    %531 = vmatpush.msra.mxu0 0.0
    %532 = vmatpush.msra.mxu0 0.0
    %533 = vmatpush.msra.mxu0 0.0
    %534 = vmatpush.msra.mxu0 0.0
    %535 = vmatpush.msra.mxu0 %v51
    %536 = vmatpush.msra.mxu0 %v50
    %537 = vmatpush.msra.mxu0 %v49
    %538 = vmatpush.msra.mxu0 %v48
    %539 = vmatmul.f32.gmra.mxu0 %v521
    %v540 = vpop.f32.mrf.mxu0
    %v541 = vadd.f32 0.0, %v540
    %542 = vdwg.mxu0
    %v543 = vadd.f32 %v127, %v541
    %v544 = vxor.u32 %v543, 2147483648
    %v545 = vmul.f32 %v544, 1.442695
    %v546 = vpow.pop %v545
    %v547 = vadd.f32 %v546, 1.0
    %v548 = vrcp.pop %v547
    %v549 = vmul.f32 %v547, %v548
    %v550 = vsub.f32 1.0, %v549
    %v551 = vmul.f32 %v548, %v550
    %v552 = vadd.f32 %v548, %v551
    %vm553 = vweird.f32 %v547
    %vm554 = vweird.f32 %v548
    %vm555 = vmor %vm553, %vm554
    %v556 = vsel %vm555, %v548, %v552
    %v557 = vand.u32 2147483647, %v547
    %vm558 = vcmp.eq.f32.partialorder %v557, 8.507059e+37
    %v559 = vand.u32 %v547, 2147483648
    %v560 = vor.u32 1.1754944e-38, %v559
    %v561 = vsel %vm558, %v560, %v556
    %v562 = vmul.f32 1.0, %v561
    %v563 = vtanh.pop %v543
    %v564 = vmul.f32 %v562, %v445
    %566 = vrot.lane.b32.xlu0 %v563, 32
    %v567 = vpop.permute.xlu0 %566
    %v569 = vmul.f32 %v562, %v567
    %571 = vrot.lane.b32.xlu0 %v569, 32
    %v572 = vpop.permute.xlu0 %571
    %v574 = vadd.f32 %v564, %v572
    %v575 = vtanh.pop %v574
    %577 = vrot.lane.b32.xlu0 %v575, 32
    %v578 = vpop.permute.xlu0 %577
    %v580 = vmul.f32 %v562, %v578
    %582 = vrot.lane.b32.xlu0 %v580, 64
    %v583 = vpop.permute.xlu0 %582
    %586 = vrot.lane.b32.xlu0 %v520, 96
    %v587 = vpop.permute.xlu0 %586
    %v589 = vsel %vm132, %v583, %v587
    %v591 = vsel %vm202, %v589, 0
    %593 = vmatpush.msra.mxu0 0.0
    %594 = vmatpush.msra.mxu0 0.0
    %595 = vmatpush.msra.mxu0 0.0
    %596 = vmatpush.msra.mxu0 0.0
    %597 = vmatpush.msra.mxu0 0.0
    %598 = vmatpush.msra.mxu0 0.0
    %599 = vmatpush.msra.mxu0 0.0
    %600 = vmatpush.msra.mxu0 0.0
    %601 = vmatpush.msra.mxu0 %v60
    %602 = vmatpush.msra.mxu0 %v59
    %603 = vmatpush.msra.mxu0 %v58
    %604 = vmatpush.msra.mxu0 %v57
    %605 = vmatpush.msra.mxu0 %v56
    %606 = vmatpush.msra.mxu0 %v55
    %607 = vmatpush.msra.mxu0 %v54
    %608 = vmatpush.msra.mxu0 %v53
    %609 = vmatmul.f32.gmra.mxu0 %v591
    %v610 = vpop.f32.mrf.mxu0
    %v611 = vadd.f32 %v200, %v610
    %612 = vdwg.mxu0
    %v613 = vxor.u32 %v611, 2147483648
    %v614 = vmul.f32 %v613, 1.442695
    %v615 = vpow.pop %v614
    %v616 = vadd.f32 %v615, 1.0
    %v617 = vrcp.pop %v616
    %v618 = vmul.f32 %v616, %v617
    %v619 = vsub.f32 1.0, %v618
    %v620 = vmul.f32 %v617, %v619
    %v621 = vadd.f32 %v617, %v620
    %vm622 = vweird.f32 %v616
    %vm623 = vweird.f32 %v617
    %vm624 = vmor %vm622, %vm623
    %v625 = vsel %vm624, %v617, %v621
    %v626 = vand.u32 2147483647, %v616
    %vm627 = vcmp.eq.f32.partialorder %v626, 8.507059e+37
    %v628 = vand.u32 %v616, 2147483648
    %v629 = vor.u32 1.1754944e-38, %v628
    %v630 = vsel %vm627, %v629, %v625
    %v631 = vmul.f32 1.0, %v630
    %v632 = vtanh.pop %v611
    %v633 = vmul.f32 %v631, %v514
    %635 = vrot.lane.b32.xlu0 %v632, 32
    %v636 = vpop.permute.xlu0 %635
    %v638 = vmul.f32 %v631, %v636
    %640 = vrot.lane.b32.xlu0 %v638, 32
    %v641 = vpop.permute.xlu0 %640
    %v643 = vadd.f32 %v633, %v641
    %v644 = vtanh.pop %v643
    %646 = vrot.lane.b32.xlu0 %v644, 32
    %v647 = vpop.permute.xlu0 %646
    %v649 = vmul.f32 %v631, %v647
    %v650 = vsel %vm132, %v583, 0
    %652 = vmatpush.msra.mxu0 0.0
    %653 = vmatpush.msra.mxu0 0.0
    %654 = vmatpush.msra.mxu0 0.0
    %655 = vmatpush.msra.mxu0 0.0
    %656 = vmatpush.msra.mxu0 0.0
    %657 = vmatpush.msra.mxu0 0.0
    %658 = vmatpush.msra.mxu0 0.0
    %659 = vmatpush.msra.mxu0 0.0
    %660 = vmatpush.msra.mxu0 0.0
    %661 = vmatpush.msra.mxu0 0.0
    %662 = vmatpush.msra.mxu0 0.0
    %663 = vmatpush.msra.mxu0 0.0
    %664 = vmatpush.msra.mxu0 %v51
    %665 = vmatpush.msra.mxu0 %v50
    %666 = vmatpush.msra.mxu0 %v49
    %667 = vmatpush.msra.mxu0 %v48
    %668 = vmatmul.f32.gmra.mxu0 %v650
    %v669 = vpop.f32.mrf.mxu0
    %v670 = vadd.f32 0.0, %v669
    %671 = vdwg.mxu0
    %v672 = vadd.f32 %v128, %v670
    %v673 = vxor.u32 %v672, 2147483648
    %v674 = vmul.f32 %v673, 1.442695
    %v675 = vpow.pop %v674
    %v676 = vadd.f32 %v675, 1.0
    %v677 = vrcp.pop %v676
    %v678 = vmul.f32 %v676, %v677
    %v679 = vsub.f32 1.0, %v678
    %v680 = vmul.f32 %v677, %v679
    %v681 = vadd.f32 %v677, %v680
    %vm682 = vweird.f32 %v676
    %vm683 = vweird.f32 %v677
    %vm684 = vmor %vm682, %vm683
    %v685 = vsel %vm684, %v677, %v681
    %v686 = vand.u32 2147483647, %v676
    %vm687 = vcmp.eq.f32.partialorder %v686, 8.507059e+37
    %v688 = vand.u32 %v676, 2147483648
    %v689 = vor.u32 1.1754944e-38, %v688
    %v690 = vsel %vm687, %v689, %v685
    %v691 = vmul.f32 1.0, %v690
    %v692 = vtanh.pop %v672
    %v693 = vmul.f32 %v691, %v574
    %695 = vrot.lane.b32.xlu0 %v692, 32
    %v696 = vpop.permute.xlu0 %695
    %v698 = vmul.f32 %v691, %v696
    %700 = vrot.lane.b32.xlu0 %v698, 32
    %v701 = vpop.permute.xlu0 %700
    %v703 = vadd.f32 %v693, %v701
    %v704 = vtanh.pop %v703
    %706 = vrot.lane.b32.xlu0 %v704, 32
    %v707 = vpop.permute.xlu0 %706
    %v709 = vmul.f32 %v691, %v707
    %711 = vrot.lane.b32.xlu0 %v709, 64
    %v712 = vpop.permute.xlu0 %711
    %715 = vrot.lane.b32.xlu0 %v649, 96
    %v716 = vpop.permute.xlu0 %715
    %v718 = vsel %vm132, %v712, %v716
    %v720 = vsel %vm202, %v718, 0
    %722 = vmatpush.msra.mxu0 0.0
    %723 = vmatpush.msra.mxu0 0.0
    %724 = vmatpush.msra.mxu0 0.0
    %725 = vmatpush.msra.mxu0 0.0
    %726 = vmatpush.msra.mxu0 0.0
    %727 = vmatpush.msra.mxu0 0.0
    %728 = vmatpush.msra.mxu0 0.0
    %729 = vmatpush.msra.mxu0 0.0
    %730 = vmatpush.msra.mxu0 %v60
    %731 = vmatpush.msra.mxu0 %v59
    %732 = vmatpush.msra.mxu0 %v58
    %733 = vmatpush.msra.mxu0 %v57
    %734 = vmatpush.msra.mxu0 %v56
    %735 = vmatpush.msra.mxu0 %v55
    %736 = vmatpush.msra.mxu0 %v54
    %737 = vmatpush.msra.mxu0 %v53
    %738 = vmatmul.f32.gmra.mxu0 %v720
    %v739 = vpop.f32.mrf.mxu0
    %v740 = vadd.f32 %v200, %v739
    %741 = vdwg.mxu0
    %v742 = vxor.u32 %v740, 2147483648
    %v743 = vmul.f32 %v742, 1.442695
    %v744 = vpow.pop %v743
    %v745 = vadd.f32 %v744, 1.0
    %v746 = vrcp.pop %v745
    %v747 = vmul.f32 %v745, %v746
    %v748 = vsub.f32 1.0, %v747
    %v749 = vmul.f32 %v746, %v748
    %v750 = vadd.f32 %v746, %v749
    %vm751 = vweird.f32 %v745
    %vm752 = vweird.f32 %v746
    %vm753 = vmor %vm751, %vm752
    %v754 = vsel %vm753, %v746, %v750
    %v755 = vand.u32 2147483647, %v745
    %vm756 = vcmp.eq.f32.partialorder %v755, 8.507059e+37
    %v757 = vand.u32 %v745, 2147483648
    %v758 = vor.u32 1.1754944e-38, %v757
    %v759 = vsel %vm756, %v758, %v754
    %v760 = vmul.f32 1.0, %v759
    %v761 = vtanh.pop %v740
    %v762 = vmul.f32 %v760, %v643
    %764 = vrot.lane.b32.xlu0 %v761, 32
    %v765 = vpop.permute.xlu0 %764
    %v767 = vmul.f32 %v760, %v765
    %769 = vrot.lane.b32.xlu0 %v767, 32
    %v770 = vpop.permute.xlu0 %769
    %v772 = vadd.f32 %v762, %v770
    %v773 = vtanh.pop %v772
    %775 = vrot.lane.b32.xlu0 %v773, 32
    %v776 = vpop.permute.xlu0 %775
    %v778 = vmul.f32 %v760, %v776
    %v779 = vsel %vm132, %v712, 0
    %781 = vmatpush.msra.mxu0 0.0
    %782 = vmatpush.msra.mxu0 0.0
    %783 = vmatpush.msra.mxu0 0.0
    %784 = vmatpush.msra.mxu0 0.0
    %785 = vmatpush.msra.mxu0 0.0
    %786 = vmatpush.msra.mxu0 0.0
    %787 = vmatpush.msra.mxu0 0.0
    %788 = vmatpush.msra.mxu0 0.0
    %789 = vmatpush.msra.mxu0 0.0
    %790 = vmatpush.msra.mxu0 0.0
    %791 = vmatpush.msra.mxu0 0.0
    %792 = vmatpush.msra.mxu0 0.0
    %793 = vmatpush.msra.mxu0 %v51
    %794 = vmatpush.msra.mxu0 %v50
    %795 = vmatpush.msra.mxu0 %v49
    %796 = vmatpush.msra.mxu0 %v48
    %797 = vmatmul.f32.gmra.mxu0 %v779
    %v798 = vpop.f32.mrf.mxu0
    %v799 = vadd.f32 0.0, %v798
    %800 = vdwg.mxu0
    %v801 = vadd.f32 %v129, %v799
    %v802 = vxor.u32 %v801, 2147483648
    %v803 = vmul.f32 %v802, 1.442695
    %v804 = vpow.pop %v803
    %v805 = vadd.f32 %v804, 1.0
    %v806 = vrcp.pop %v805
    %v807 = vmul.f32 %v805, %v806
    %v808 = vsub.f32 1.0, %v807
    %v809 = vmul.f32 %v806, %v808
    %v810 = vadd.f32 %v806, %v809
    %vm811 = vweird.f32 %v805
    %vm812 = vweird.f32 %v806
    %vm813 = vmor %vm811, %vm812
    %v814 = vsel %vm813, %v806, %v810
    %v815 = vand.u32 2147483647, %v805
    %vm816 = vcmp.eq.f32.partialorder %v815, 8.507059e+37
    %v817 = vand.u32 %v805, 2147483648
    %v818 = vor.u32 1.1754944e-38, %v817
    %v819 = vsel %vm816, %v818, %v814
    %v820 = vmul.f32 1.0, %v819
    %v821 = vtanh.pop %v801
    %v822 = vmul.f32 %v820, %v703
    %824 = vrot.lane.b32.xlu0 %v821, 32
    %v825 = vpop.permute.xlu0 %824
    %v827 = vmul.f32 %v820, %v825
    %829 = vrot.lane.b32.xlu0 %v827, 32
    %v830 = vpop.permute.xlu0 %829
    %v832 = vadd.f32 %v822, %v830
    %v833 = vtanh.pop %v832
    %835 = vrot.lane.b32.xlu0 %v833, 32
    %v836 = vpop.permute.xlu0 %835
    %v838 = vmul.f32 %v820, %v836
    %840 = vrot.lane.b32.xlu0 %v838, 64
    %v841 = vpop.permute.xlu0 %840
    %844 = vrot.lane.b32.xlu0 %v778, 96
    %v845 = vpop.permute.xlu0 %844
    %v847 = vsel %vm132, %v841, %v845
    %v849 = vsel %vm202, %v847, 0
    %851 = vmatpush.msra.mxu0 0.0
    %852 = vmatpush.msra.mxu0 0.0
    %853 = vmatpush.msra.mxu0 0.0
    %854 = vmatpush.msra.mxu0 0.0
    %855 = vmatpush.msra.mxu0 0.0
    %856 = vmatpush.msra.mxu0 0.0
    %857 = vmatpush.msra.mxu0 0.0
    %858 = vmatpush.msra.mxu0 0.0
    %859 = vmatpush.msra.mxu0 %v60
    %860 = vmatpush.msra.mxu0 %v59
    %861 = vmatpush.msra.mxu0 %v58
    %862 = vmatpush.msra.mxu0 %v57
    %863 = vmatpush.msra.mxu0 %v56
    %864 = vmatpush.msra.mxu0 %v55
    %865 = vmatpush.msra.mxu0 %v54
    %866 = vmatpush.msra.mxu0 %v53
    %867 = vmatmul.f32.gmra.mxu0 %v849
    %v868 = vpop.f32.mrf.mxu0
    %v869 = vadd.f32 %v200, %v868
    %870 = vdwg.mxu0
    %v871 = vxor.u32 %v869, 2147483648
    %v872 = vmul.f32 %v871, 1.442695
    %v873 = vpow.pop %v872
    %v874 = vadd.f32 %v873, 1.0
    %v875 = vrcp.pop %v874
    %v876 = vmul.f32 %v874, %v875
    %v877 = vsub.f32 1.0, %v876
    %v878 = vmul.f32 %v875, %v877
    %v879 = vadd.f32 %v875, %v878
    %vm880 = vweird.f32 %v874
    %vm881 = vweird.f32 %v875
    %vm882 = vmor %vm880, %vm881
    %v883 = vsel %vm882, %v875, %v879
    %v884 = vand.u32 2147483647, %v874
    %vm885 = vcmp.eq.f32.partialorder %v884, 8.507059e+37
    %v886 = vand.u32 %v874, 2147483648
    %v887 = vor.u32 1.1754944e-38, %v886
    %v888 = vsel %vm885, %v887, %v883
    %v889 = vmul.f32 1.0, %v888
    %v890 = vtanh.pop %v869
    %v891 = vmul.f32 %v889, %v772
    %893 = vrot.lane.b32.xlu0 %v890, 32
    %v894 = vpop.permute.xlu0 %893
    %v896 = vmul.f32 %v889, %v894
    %898 = vrot.lane.b32.xlu0 %v896, 32
    %v899 = vpop.permute.xlu0 %898
    %v901 = vadd.f32 %v891, %v899
    %v902 = vtanh.pop %v901
    %904 = vrot.lane.b32.xlu0 %v902, 32
    %v905 = vpop.permute.xlu0 %904
    %v907 = vmul.f32 %v889, %v905
    %v908 = vsel %vm132, %v841, 0
    %910 = vmatpush.msra.mxu0 0.0
    %911 = vmatpush.msra.mxu0 0.0
    %912 = vmatpush.msra.mxu0 0.0
    %913 = vmatpush.msra.mxu0 0.0
    %914 = vmatpush.msra.mxu0 0.0
    %915 = vmatpush.msra.mxu0 0.0
    %916 = vmatpush.msra.mxu0 0.0
    %917 = vmatpush.msra.mxu0 0.0
    %918 = vmatpush.msra.mxu0 0.0
    %919 = vmatpush.msra.mxu0 0.0
    %920 = vmatpush.msra.mxu0 0.0
    %921 = vmatpush.msra.mxu0 0.0
    %922 = vmatpush.msra.mxu0 %v51
    %923 = vmatpush.msra.mxu0 %v50
    %924 = vmatpush.msra.mxu0 %v49
    %925 = vmatpush.msra.mxu0 %v48
    %926 = vmatmul.f32.gmra.mxu0 %v908
    %v927 = vpop.f32.mrf.mxu0
    %v928 = vadd.f32 0.0, %v927
    %929 = vdwg.mxu0
    %v930 = vadd.f32 %v130, %v928
    %v931 = vxor.u32 %v930, 2147483648
    %v932 = vmul.f32 %v931, 1.442695
    %v933 = vpow.pop %v932
    %v934 = vadd.f32 %v933, 1.0
    %v935 = vrcp.pop %v934
    %v936 = vmul.f32 %v934, %v935
    %v937 = vsub.f32 1.0, %v936
    %v938 = vmul.f32 %v935, %v937
    %v939 = vadd.f32 %v935, %v938
    %vm940 = vweird.f32 %v934
    %vm941 = vweird.f32 %v935
    %vm942 = vmor %vm940, %vm941
    %v943 = vsel %vm942, %v935, %v939
    %v944 = vand.u32 2147483647, %v934
    %vm945 = vcmp.eq.f32.partialorder %v944, 8.507059e+37
    %v946 = vand.u32 %v934, 2147483648
    %v947 = vor.u32 1.1754944e-38, %v946
    %v948 = vsel %vm945, %v947, %v943
    %v949 = vmul.f32 1.0, %v948
    %v950 = vtanh.pop %v930
    %v951 = vmul.f32 %v949, %v832
    %953 = vrot.lane.b32.xlu0 %v950, 32
    %v954 = vpop.permute.xlu0 %953
    %v956 = vmul.f32 %v949, %v954
    %958 = vrot.lane.b32.xlu0 %v956, 32
    %v959 = vpop.permute.xlu0 %958
    %v961 = vadd.f32 %v951, %v959
    %v962 = vtanh.pop %v961
    %964 = vrot.lane.b32.xlu0 %v962, 32
    %v965 = vpop.permute.xlu0 %964
    %v967 = vmul.f32 %v949, %v965
    %969 = vrot.lane.b32.xlu0 %v967, 64
    %v970 = vpop.permute.xlu0 %969
    %973 = vrot.lane.b32.xlu0 %v907, 96
    %v974 = vpop.permute.xlu0 %973
    %v976 = vsel %vm132, %v970, %v974
    %v978 = vsel %vm202, %v976, 0
    %980 = vmatpush.msra.mxu0 0.0
    %981 = vmatpush.msra.mxu0 0.0
    %982 = vmatpush.msra.mxu0 0.0
    %983 = vmatpush.msra.mxu0 0.0
    %984 = vmatpush.msra.mxu0 0.0
    %985 = vmatpush.msra.mxu0 0.0
    %986 = vmatpush.msra.mxu0 0.0
    %987 = vmatpush.msra.mxu0 0.0
    %988 = vmatpush.msra.mxu0 %v60
    %989 = vmatpush.msra.mxu0 %v59
    %990 = vmatpush.msra.mxu0 %v58
    %991 = vmatpush.msra.mxu0 %v57
    %992 = vmatpush.msra.mxu0 %v56
    %993 = vmatpush.msra.mxu0 %v55
    %994 = vmatpush.msra.mxu0 %v54
    %995 = vmatpush.msra.mxu0 %v53
    %996 = vmatmul.f32.gmra.mxu0 %v978
    %v997 = vpop.f32.mrf.mxu0
    %v998 = vadd.f32 %v200, %v997
    %999 = vdwg.mxu0
    %v1000 = vxor.u32 %v998, 2147483648
    %v1001 = vmul.f32 %v1000, 1.442695
    %v1002 = vpow.pop %v1001
    %v1003 = vadd.f32 %v1002, 1.0
    %v1004 = vrcp.pop %v1003
    %v1005 = vmul.f32 %v1003, %v1004
    %v1006 = vsub.f32 1.0, %v1005
    %v1007 = vmul.f32 %v1004, %v1006
    %v1008 = vadd.f32 %v1004, %v1007
    %vm1009 = vweird.f32 %v1003
    %vm1010 = vweird.f32 %v1004
    %vm1011 = vmor %vm1009, %vm1010
    %v1012 = vsel %vm1011, %v1004, %v1008
    %v1013 = vand.u32 2147483647, %v1003
    %vm1014 = vcmp.eq.f32.partialorder %v1013, 8.507059e+37
    %v1015 = vand.u32 %v1003, 2147483648
    %v1016 = vor.u32 1.1754944e-38, %v1015
    %v1017 = vsel %vm1014, %v1016, %v1012
    %v1018 = vmul.f32 1.0, %v1017
    %v1019 = vtanh.pop %v998
    %v1020 = vmul.f32 %v1018, %v901
    %1022 = vrot.lane.b32.xlu0 %v1019, 32
    %v1023 = vpop.permute.xlu0 %1022
    %v1025 = vmul.f32 %v1018, %v1023
    %1027 = vrot.lane.b32.xlu0 %v1025, 32
    %v1028 = vpop.permute.xlu0 %1027
    %v1030 = vadd.f32 %v1020, %v1028
    %v1031 = vtanh.pop %v1030
    %1033 = vrot.lane.b32.xlu0 %v1031, 32
    %v1034 = vpop.permute.xlu0 %1033
    %v1036 = vmul.f32 %v1018, %v1034
    %v1037 = vsel %vm132, %v970, 0
    %1039 = vmatpush.msra.mxu0 0.0
    %1040 = vmatpush.msra.mxu0 0.0
    %1041 = vmatpush.msra.mxu0 0.0
    %1042 = vmatpush.msra.mxu0 0.0
    %1043 = vmatpush.msra.mxu0 0.0
    %1044 = vmatpush.msra.mxu0 0.0
    %1045 = vmatpush.msra.mxu0 0.0
    %1046 = vmatpush.msra.mxu0 0.0
    %1047 = vmatpush.msra.mxu0 0.0
    %1048 = vmatpush.msra.mxu0 0.0
    %1049 = vmatpush.msra.mxu0 0.0
    %1050 = vmatpush.msra.mxu0 0.0
    %1051 = vmatpush.msra.mxu0 %v51
    %1052 = vmatpush.msra.mxu0 %v50
    %1053 = vmatpush.msra.mxu0 %v49
    %1054 = vmatpush.msra.mxu0 %v48
    %1055 = vmatmul.f32.gmra.mxu0 %v1037
    %v1056 = vpop.f32.mrf.mxu0
    %v1057 = vadd.f32 0.0, %v1056
    %1058 = vdwg.mxu0
    %v1059 = vadd.f32 %v131, %v1057
    %v1060 = vxor.u32 %v1059, 2147483648
    %v1061 = vmul.f32 %v1060, 1.442695
    %v1062 = vpow.pop %v1061
    %v1063 = vadd.f32 %v1062, 1.0
    %v1064 = vrcp.pop %v1063
    %v1065 = vmul.f32 %v1063, %v1064
    %v1066 = vsub.f32 1.0, %v1065
    %v1067 = vmul.f32 %v1064, %v1066
    %v1068 = vadd.f32 %v1064, %v1067
    %vm1069 = vweird.f32 %v1063
    %vm1070 = vweird.f32 %v1064
    %vm1071 = vmor %vm1069, %vm1070
    %v1072 = vsel %vm1071, %v1064, %v1068
    %v1073 = vand.u32 2147483647, %v1063
    %vm1074 = vcmp.eq.f32.partialorder %v1073, 8.507059e+37
    %v1075 = vand.u32 %v1063, 2147483648
    %v1076 = vor.u32 1.1754944e-38, %v1075
    %v1077 = vsel %vm1074, %v1076, %v1072
    %v1078 = vmul.f32 1.0, %v1077
    %v1079 = vtanh.pop %v1059
    %v1080 = vmul.f32 %v1078, %v961
    %1082 = vrot.lane.b32.xlu0 %v1079, 32
    %v1083 = vpop.permute.xlu0 %1082
    %v1085 = vmul.f32 %v1078, %v1083
    %1087 = vrot.lane.b32.xlu0 %v1085, 32
    %v1088 = vpop.permute.xlu0 %1087
    %v1090 = vadd.f32 %v1080, %v1088
    %v1091 = vtanh.pop %v1090
    %1093 = vrot.lane.b32.xlu0 %v1091, 32
    %v1094 = vpop.permute.xlu0 %1093
    %v1096 = vmul.f32 %v1078, %v1094
    %1098 = vrot.lane.b32.xlu0 %v1096, 64
    %v1099 = vpop.permute.xlu0 %1098
    %1102 = vrot.lane.b32.xlu0 %v1036, 96
    %v1103 = vpop.permute.xlu0 %1102
    %v1105 = vsel %vm132, %v1099, %v1103
    %v1107 = vsel %vm202, %v1105, 0
    %1109 = vmatpush.msra.mxu0 0.0
    %1110 = vmatpush.msra.mxu0 0.0
    %1111 = vmatpush.msra.mxu0 0.0
    %1112 = vmatpush.msra.mxu0 0.0
    %1113 = vmatpush.msra.mxu0 0.0
    %1114 = vmatpush.msra.mxu0 0.0
    %1115 = vmatpush.msra.mxu0 0.0
    %1116 = vmatpush.msra.mxu0 0.0
    %1117 = vmatpush.msra.mxu0 %v60
    %1118 = vmatpush.msra.mxu0 %v59
    %1119 = vmatpush.msra.mxu0 %v58
    %1120 = vmatpush.msra.mxu0 %v57
    %1121 = vmatpush.msra.mxu0 %v56
    %1122 = vmatpush.msra.mxu0 %v55
    %1123 = vmatpush.msra.mxu0 %v54
    %1124 = vmatpush.msra.mxu0 %v53
    %1125 = vmatmul.f32.gmra.mxu0 %v1107
    %v1126 = vpop.f32.mrf.mxu0
    %v1127 = vadd.f32 %v200, %v1126
    %1128 = vdwg.mxu0
    %v1129 = vxor.u32 %v1127, 2147483648
    %v1130 = vmul.f32 %v1129, 1.442695
    %v1131 = vpow.pop %v1130
    %v1132 = vadd.f32 %v1131, 1.0
    %v1133 = vrcp.pop %v1132
    %v1134 = vmul.f32 %v1132, %v1133
    %v1135 = vsub.f32 1.0, %v1134
    %v1136 = vmul.f32 %v1133, %v1135
    %v1137 = vadd.f32 %v1133, %v1136
    %vm1138 = vweird.f32 %v1132
    %vm1139 = vweird.f32 %v1133
    %vm1140 = vmor %vm1138, %vm1139
    %v1141 = vsel %vm1140, %v1133, %v1137
    %v1142 = vand.u32 2147483647, %v1132
    %vm1143 = vcmp.eq.f32.partialorder %v1142, 8.507059e+37
    %v1144 = vand.u32 %v1132, 2147483648
    %v1145 = vor.u32 1.1754944e-38, %v1144
    %v1146 = vsel %vm1143, %v1145, %v1141
    %v1147 = vmul.f32 1.0, %v1146
    %v1148 = vtanh.pop %v1127
    %v1149 = vmul.f32 %v1147, %v1030
    %1151 = vrot.lane.b32.xlu0 %v1148, 32
    %v1152 = vpop.permute.xlu0 %1151
    %v1154 = vmul.f32 %v1147, %v1152
    %1156 = vrot.lane.b32.xlu0 %v1154, 32
    %v1157 = vpop.permute.xlu0 %1156
    %v1159 = vadd.f32 %v1149, %v1157
    %v1160 = vtanh.pop %v1159
    %1162 = vrot.lane.b32.xlu0 %v1160, 32
    %v1163 = vpop.permute.xlu0 %1162
    %v1165 = vmul.f32 %v1147, %v1163
    %v1166 = vld [vmem:[%s6] sm:$0x1]
    %v1168 = vperm.slane %v1166, 0
    %1169 = vrot.lane.b32.xlu0 %v1168, 64
    %v1170 = vpop.permute.xlu0 %1169
    %v1172 = vmul.f32 %v1165, %v1170
    %1174 = vrot.lane.b32.xlu0 %v1172, 64
    %v1175 = vpop.permute.xlu0 %1174
    %v1177 = vsel %vm132, %v1175, 0.0
    %1178 = vadd.xlane.f32.xlu0 %v1177
    %v1179 = vpop.xlane.xlu0 %1178
    %v1180 = vld [vmem:[#allocation2] sm:$0x1]
    %v1182 = vperm.slane %v1180, 0
    %v1184 = vadd.f32 %v1179, %v1182
    %vm1185 = vcmask 7168
    %1186 = vst.msk [vmem:[%s8] sm:$0xff] %vm1185, %v1184
    // Predicated region
    $region38: #{tpu_custom_call.1} parent=1 // pred_check
      _
    $region39: #{tpu_custom_call.1} parent=1 // pred_check_branch
      %1188 = sbr.rel (0) target = $region41
    $region40: #{tpu_custom_call.1} parent=1 // pred_region
      _
    $region41: #{tpu_custom_call.1} parent=1 // pred_fallthru
      _
    // Predicated region
    $region42: #{tpu_custom_call.1} parent=1 // pred_check
      _
    $region43: #{tpu_custom_call.1} parent=1 // pred_check_branch
      %1190 = sbr.rel (0) target = $region45
    $region44: #{tpu_custom_call.1} parent=1 // pred_region
      _
    $region45: #{tpu_custom_call.1} parent=1 // pred_fallthru
      _
    %1191 = vsyncpa [#allocation4], 1

</llo_original>
